<compile_context>
chip_gen: v6e
topology: v6e:2x2x1
jax: 0.10.0
libtpu: 0.0.40
codegen_flags: <defaults>
</compile_context>

<pallas_src>
import jax
import jax.numpy as jnp
from jax.experimental import pallas as pl
from jax.experimental.pallas import tpu as pltpu

# Model constants (classification_mode='multi')
C_OUT = 8                  # conv out channels
RATIO = 4
HID = C_OUT // RATIO       # 2
KH = KW = 2                # conv kernel
H_IN = W_IN = 14           # conv output 13x13 -> 8*13*13 = 1352 = fc in_features
H_OUT = W_OUT = 13
HW = H_OUT * W_OUT         # 169
N_CLASSES = 5              # 'multi' -> Softmax(dim=1)
TB = 8                     # batch tile per grid step (sublane aligned)


def _se_kernel(patches_ref, convw_ref, convb_ref, w1t_ref, w2t_ref,
               fcw_ref, fcb_ref, out_ref):
    """One batch tile per grid step.

    patches_ref : (TB, 4, 169)  im2col'd input, tap p = di*KW + dj on the middle axis
    convw_ref   : (4, 8, 1)     conv weight, convw[p, o, 0] = W[o, 0, di, dj]
    convb_ref   : (8, 1)        conv bias
    w1t_ref     : (8, 2)        SE linear1.weight.T
    w2t_ref     : (2, 8)        SE linear2.weight.T
    fcw_ref     : (5, 8, 169)   fc weight in NCHW flatten order, lane-dense
    fcb_ref     : (1, 5)        fc bias
    out_ref     : (TB, 5)       softmax probabilities
    """
    patches = patches_ref[...]                                        # (TB, 4, 169)

    # ---- Conv2d(1 -> 8, k=2, s=1) + bias + ReLU: 4 broadcast FMAs on the packed slab
    y = convw_ref[0][None, :, :] * patches[:, 0:1, :]                 # (TB, 8, 169)
    for p in range(1, KH * KW):
        y = y + convw_ref[p][None, :, :] * patches[:, p:p + 1, :]
    y = jnp.maximum(y + convb_ref[...][None, :, :], 0.0)

    # ---- SEBlock2D: global avg pool (one lane reduce), 2 tiny FCs, one sigmoid ----
    pooled = jnp.sum(y, axis=-1) * (1.0 / float(HW))                  # (TB, 8)
    hid = jnp.maximum(
        jnp.dot(pooled, w1t_ref[...], preferred_element_type=jnp.float32), 0.0)  # (TB, 2)
    glog = jnp.dot(hid, w2t_ref[...], preferred_element_type=jnp.float32)        # (TB, 8)
    gate = 1.0 / (1.0 + jnp.exp(-glog))                               # sigmoid, (TB, 8)

    # ---- SE reweight + outer ReLU + Flatten + Dropout + fc(1352 -> 5) ----
    # relu(y * gate) == y * gate (y >= 0 post-ReLU, gate >= 0), so fold the gate into
    # the fc contraction: logit[b,k] = sum_c gate[b,c] * (sum_l y[b,c,l]*fcw[k,c,l]) + fcb[k]
    # TODO(synk): nn.Dropout(0.1) treated as inference-mode identity (no RNG mask).
    cols = []
    for k in range(N_CLASSES):
        s_k = jnp.sum(y * fcw_ref[k][None, :, :], axis=-1)            # (TB, 8)
        cols.append(jnp.sum(gate * s_k, axis=-1, keepdims=True))      # (TB, 1)
    logits = jnp.concatenate(cols, axis=-1) + fcb_ref[...]            # (TB, 5)

    # ---- Softmax over the class axis: one exp, one exact reciprocal, one bulk store
    m = jnp.max(logits, axis=-1, keepdims=True)
    e = jnp.exp(logits - m)
    denom = jnp.sum(e, axis=-1, keepdims=True)
    out_ref[...] = e * pl.reciprocal(denom)                           # exact 1/denom


@jax.jit
def se_forward(x, conv_w, conv_b, w1, w2, fc_w, fc_b):
    B = x.shape[0]
    x2 = x.reshape(B, H_IN, W_IN).astype(jnp.float32)                 # squeeze C=1

    # im2col hoisted out of the kernel: one flattened (169,) row per 2x2 kernel tap.
    patches = jnp.stack(
        [x2[:, di:di + H_OUT, dj:dj + W_OUT].reshape(B, HW)
         for di in range(KH) for dj in range(KW)], axis=1)            # (B, 4, 169)

    b_pad = pl.cdiv(B, TB) * TB
    if b_pad != B:                                                    # pad last batch tile
        patches = jnp.pad(patches, ((0, b_pad - B), (0, 0), (0, 0)))

    convw_t = conv_w.reshape(C_OUT, KH * KW).T.reshape(KH * KW, C_OUT, 1).astype(jnp.float32)
    convb2 = conv_b.reshape(C_OUT, 1).astype(jnp.float32)
    w1t = w1.T.astype(jnp.float32)                                    # (8, 2)
    w2t = w2.T.astype(jnp.float32)                                    # (2, 8)
    fcw3 = fc_w.reshape(N_CLASSES, C_OUT, HW).astype(jnp.float32)     # lane-dense (5,8,169)
    fcb2 = fc_b.reshape(1, N_CLASSES).astype(jnp.float32)

    out = pl.pallas_call(
        _se_kernel,
        out_shape=jax.ShapeDtypeStruct((b_pad, N_CLASSES), jnp.float32),
        grid=(b_pad // TB,),
        in_specs=[
            pl.BlockSpec((TB, KH * KW, HW), lambda i: (i, 0, 0)),      # patches (blocked on batch)
            pl.BlockSpec((KH * KW, C_OUT, 1), lambda i: (0, 0, 0)),    # conv weight
            pl.BlockSpec((C_OUT, 1), lambda i: (0, 0)),                # conv bias
            pl.BlockSpec((C_OUT, HID), lambda i: (0, 0)),              # w1.T
            pl.BlockSpec((HID, C_OUT), lambda i: (0, 0)),              # w2.T
            pl.BlockSpec((N_CLASSES, C_OUT, HW), lambda i: (0, 0, 0)), # fc weight
            pl.BlockSpec((1, N_CLASSES), lambda i: (0, 0)),            # fc bias
        ],
        out_specs=pl.BlockSpec((TB, N_CLASSES), lambda i: (i, 0)),
        compiler_params=pltpu.CompilerParams(
            dimension_semantics=("parallel",)),   # batch tiles are independent (v7x 2-TC)
    )(patches, convw_t, convb2, w1t, w2t, fcw3, fcb2)
    return out[:B]


def se_reference(x, conv_w, conv_b, w1, w2, fc_w, fc_b):
    hp = jax.lax.Precision.HIGHEST
    y = jax.lax.conv_general_dilated(
        x, conv_w, window_strides=(1, 1), padding='VALID',
        dimension_numbers=('NCHW', 'OIHW', 'NCHW'), precision=hp)
    y = jnp.maximum(y + conv_b.reshape(1, -1, 1, 1), 0.0)
    pooled = jnp.mean(y, axis=(2, 3))                                  # (B, 8)
    h = jnp.maximum(jnp.einsum('bc,hc->bh', pooled, w1, precision=hp), 0.0)
    g = 1.0 / (1.0 + jnp.exp(-jnp.einsum('bh,ch->bc', h, w2, precision=hp)))
    z = jnp.maximum(y * g[:, :, None, None], 0.0)
    flat = z.reshape(x.shape[0], -1)                                   # (B, 1352)
    logits = jnp.einsum('bf,kf->bk', flat, fc_w, precision=hp) + fc_b
    return jax.nn.softmax(logits, axis=1)


if __name__ == "__main__":
    key = jax.random.PRNGKey(0)
    ks = jax.random.split(key, 7)
    B = 2
    x = jax.random.normal(ks[0], (B, 1, H_IN, W_IN), jnp.float32)
    conv_w = jax.random.normal(ks[1], (C_OUT, 1, KH, KW), jnp.float32) * 0.5
    conv_b = jax.random.normal(ks[2], (C_OUT,), jnp.float32) * 0.1
    w1 = jax.random.normal(ks[3], (HID, C_OUT), jnp.float32) * 0.3
    w2 = jax.random.normal(ks[4], (C_OUT, HID), jnp.float32) * 0.3
    fc_w = jax.random.normal(ks[5], (N_CLASSES, C_OUT * H_OUT * W_OUT), jnp.float32) * 0.05
    fc_b = jax.random.normal(ks[6], (N_CLASSES,), jnp.float32) * 0.1

    out = se_forward(x, conv_w, conv_b, w1, w2, fc_w, fc_b)
    out = jax.block_until_ready(out)

    ref = se_reference(x, conv_w, conv_b, w1, w2, fc_w, fc_b)
    assert out.shape == (B, N_CLASSES)
    assert jnp.allclose(out, ref, rtol=1e-3, atol=1e-4), (out, ref)
    print("KERNEL_OK")
</pallas_src>

<mosaic_0001>
module attributes {stable_mosaic.version = 11 : i64} {
  func.func @_se_kernel(%arg0: i32, %arg1: memref<8x4x169xf32, #tpu.memory_space<vmem>>, %arg2: memref<4x8x1xf32, #tpu.memory_space<vmem>>, %arg3: memref<8x1xf32, #tpu.memory_space<vmem>>, %arg4: memref<8x2xf32, #tpu.memory_space<vmem>>, %arg5: memref<2x8xf32, #tpu.memory_space<vmem>>, %arg6: memref<5x8x169xf32, #tpu.memory_space<vmem>>, %arg7: memref<1x5xf32, #tpu.memory_space<vmem>>, %arg8: memref<8x5xf32, #tpu.memory_space<vmem>>) attributes {dimension_semantics = [#tpu.dimension_semantics<parallel>], iteration_bounds = array<i64: 1>, scalar_prefetch = 0 : i64, scratch_operands = 0 : i64, tpu.core_type = #tpu.core_type<tc>, window_params = [{transform_indices = @transform_0, window_bounds = array<i64: 8, 4, 169>}, {pipeline_mode = #tpu.pipeline_mode<synchronous>, transform_indices = @transform_1, window_bounds = array<i64: 4, 8, 1>}, {pipeline_mode = #tpu.pipeline_mode<synchronous>, transform_indices = @transform_2, window_bounds = array<i64: 8, 1>}, {pipeline_mode = #tpu.pipeline_mode<synchronous>, transform_indices = @transform_3, window_bounds = array<i64: 8, 2>}, {pipeline_mode = #tpu.pipeline_mode<synchronous>, transform_indices = @transform_4, window_bounds = array<i64: 2, 8>}, {pipeline_mode = #tpu.pipeline_mode<synchronous>, transform_indices = @transform_5, window_bounds = array<i64: 5, 8, 169>}, {pipeline_mode = #tpu.pipeline_mode<synchronous>, transform_indices = @transform_6, window_bounds = array<i64: 1, 5>}, {transform_indices = @transform_7, window_bounds = array<i64: 8, 5>}]} {
    %c0 = arith.constant 0 : index
    %c0_0 = arith.constant 0 : index
    %c0_1 = arith.constant 0 : index
    %0 = vector.load %arg1[%c0, %c0_0, %c0_1] : memref<8x4x169xf32, #tpu.memory_space<vmem>>, vector<8x4x169xf32>
    %c0_2 = arith.constant 0 : index
    %c0_3 = arith.constant 0 : index
    %c0_4 = arith.constant 0 : index
    %1 = vector.load %arg2[%c0_2, %c0_3, %c0_4] : memref<4x8x1xf32, #tpu.memory_space<vmem>>, vector<1x8x1xf32>
    %2 = vector.shape_cast %1 : vector<1x8x1xf32> to vector<8x1xf32>
    %3 = vector.shape_cast %2 : vector<8x1xf32> to vector<1x8x1xf32>
    %4 = vector.extract_strided_slice %0 {offsets = [0, 0, 0], sizes = [8, 1, 169], strides = [1, 1, 1]} : vector<8x4x169xf32> to vector<8x1x169xf32>
    %5 = vector.broadcast %3 : vector<1x8x1xf32> to vector<8x8x169xf32>
    %6 = vector.broadcast %4 : vector<8x1x169xf32> to vector<8x8x169xf32>
    %7 = arith.mulf %5, %6 : vector<8x8x169xf32>
    %c1 = arith.constant 1 : index
    %c0_5 = arith.constant 0 : index
    %c0_6 = arith.constant 0 : index
    %8 = vector.load %arg2[%c1, %c0_5, %c0_6] : memref<4x8x1xf32, #tpu.memory_space<vmem>>, vector<1x8x1xf32>
    %9 = vector.shape_cast %8 : vector<1x8x1xf32> to vector<8x1xf32>
    %10 = vector.shape_cast %9 : vector<8x1xf32> to vector<1x8x1xf32>
    %11 = vector.extract_strided_slice %0 {offsets = [0, 1, 0], sizes = [8, 1, 169], strides = [1, 1, 1]} : vector<8x4x169xf32> to vector<8x1x169xf32>
    %12 = vector.broadcast %10 : vector<1x8x1xf32> to vector<8x8x169xf32>
    %13 = vector.broadcast %11 : vector<8x1x169xf32> to vector<8x8x169xf32>
    %14 = arith.mulf %12, %13 : vector<8x8x169xf32>
    %15 = arith.addf %7, %14 : vector<8x8x169xf32>
    %c2 = arith.constant 2 : index
    %c0_7 = arith.constant 0 : index
    %c0_8 = arith.constant 0 : index
    %16 = vector.load %arg2[%c2, %c0_7, %c0_8] : memref<4x8x1xf32, #tpu.memory_space<vmem>>, vector<1x8x1xf32>
    %17 = vector.shape_cast %16 : vector<1x8x1xf32> to vector<8x1xf32>
    %18 = vector.shape_cast %17 : vector<8x1xf32> to vector<1x8x1xf32>
    %19 = vector.extract_strided_slice %0 {offsets = [0, 2, 0], sizes = [8, 1, 169], strides = [1, 1, 1]} : vector<8x4x169xf32> to vector<8x1x169xf32>
    %20 = vector.broadcast %18 : vector<1x8x1xf32> to vector<8x8x169xf32>
    %21 = vector.broadcast %19 : vector<8x1x169xf32> to vector<8x8x169xf32>
    %22 = arith.mulf %20, %21 : vector<8x8x169xf32>
    %23 = arith.addf %15, %22 : vector<8x8x169xf32>
    %c3 = arith.constant 3 : index
    %c0_9 = arith.constant 0 : index
    %c0_10 = arith.constant 0 : index
    %24 = vector.load %arg2[%c3, %c0_9, %c0_10] : memref<4x8x1xf32, #tpu.memory_space<vmem>>, vector<1x8x1xf32>
    %25 = vector.shape_cast %24 : vector<1x8x1xf32> to vector<8x1xf32>
    %26 = vector.shape_cast %25 : vector<8x1xf32> to vector<1x8x1xf32>
    %27 = vector.extract_strided_slice %0 {offsets = [0, 3, 0], sizes = [8, 1, 169], strides = [1, 1, 1]} : vector<8x4x169xf32> to vector<8x1x169xf32>
    %28 = vector.broadcast %26 : vector<1x8x1xf32> to vector<8x8x169xf32>
    %29 = vector.broadcast %27 : vector<8x1x169xf32> to vector<8x8x169xf32>
    %30 = arith.mulf %28, %29 : vector<8x8x169xf32>
    %31 = arith.addf %23, %30 : vector<8x8x169xf32>
    %c0_11 = arith.constant 0 : index
    %c0_12 = arith.constant 0 : index
    %32 = vector.load %arg3[%c0_11, %c0_12] : memref<8x1xf32, #tpu.memory_space<vmem>>, vector<8x1xf32>
    %33 = vector.shape_cast %32 : vector<8x1xf32> to vector<1x8x1xf32>
    %34 = vector.broadcast %33 : vector<1x8x1xf32> to vector<8x8x169xf32>
    %35 = arith.addf %31, %34 : vector<8x8x169xf32>
    %cst = arith.constant 0.000000e+00 : f32
    %36 = vector.broadcast %cst : f32 to vector<8x8x169xf32>
    %37 = arith.maximumf %35, %36 : vector<8x8x169xf32>
    %cst_13 = arith.constant dense<0.000000e+00> : vector<8x8xf32>
    %38 = vector.multi_reduction <add>, %37, %cst_13 [2] : vector<8x8x169xf32> to vector<8x8xf32>
    %cst_14 = arith.constant 5.917160e-03 : f32
    %39 = vector.broadcast %cst_14 : f32 to vector<8x8xf32>
    %40 = arith.mulf %38, %39 : vector<8x8xf32>
    %c0_15 = arith.constant 0 : index
    %c0_16 = arith.constant 0 : index
    %41 = vector.load %arg4[%c0_15, %c0_16] : memref<8x2xf32, #tpu.memory_space<vmem>>, vector<8x2xf32>
    %cst_17 = arith.constant dense<0.000000e+00> : vector<8x2xf32>
    %42 = tpu.matmul %40, %41, %cst_17 {dimension_numbers = #tpu.dot_dimension_numbers<[1], [0], [0], [1], [0, 0, 1, 1], [], []>} : vector<8x8xf32>, vector<8x2xf32>, vector<8x2xf32> -> vector<8x2xf32>
    %cst_18 = arith.constant 0.000000e+00 : f32
    %43 = vector.broadcast %cst_18 : f32 to vector<8x2xf32>
    %44 = arith.maximumf %42, %43 : vector<8x2xf32>
    %c0_19 = arith.constant 0 : index
    %c0_20 = arith.constant 0 : index
    %45 = vector.load %arg5[%c0_19, %c0_20] : memref<2x8xf32, #tpu.memory_space<vmem>>, vector<2x8xf32>
    %cst_21 = arith.constant dense<0.000000e+00> : vector<8x8xf32>
    %46 = tpu.matmul %44, %45, %cst_21 {dimension_numbers = #tpu.dot_dimension_numbers<[1], [0], [0], [1], [0, 0, 1, 1], [], []>} : vector<8x2xf32>, vector<2x8xf32>, vector<8x8xf32> -> vector<8x8xf32>
    %cst_22 = arith.constant 0.000000e+00 : f32
    %47 = vector.broadcast %cst_22 : f32 to vector<8x8xf32>
    %48 = arith.subf %47, %46 : vector<8x8xf32>
    %49 = math.exp %48 : vector<8x8xf32>
    %cst_23 = arith.constant 1.000000e+00 : f32
    %50 = vector.broadcast %cst_23 : f32 to vector<8x8xf32>
    %51 = arith.addf %50, %49 : vector<8x8xf32>
    %cst_24 = arith.constant 1.000000e+00 : f32
    %52 = vector.broadcast %cst_24 : f32 to vector<8x8xf32>
    %53 = arith.divf %52, %51 : vector<8x8xf32>
    %c0_25 = arith.constant 0 : index
    %c0_26 = arith.constant 0 : index
    %c0_27 = arith.constant 0 : index
    %54 = vector.load %arg6[%c0_25, %c0_26, %c0_27] : memref<5x8x169xf32, #tpu.memory_space<vmem>>, vector<1x8x169xf32>
    %55 = vector.shape_cast %54 : vector<1x8x169xf32> to vector<8x169xf32>
    %56 = vector.shape_cast %55 : vector<8x169xf32> to vector<1x8x169xf32>
    %57 = vector.broadcast %56 : vector<1x8x169xf32> to vector<8x8x169xf32>
    %58 = arith.mulf %37, %57 : vector<8x8x169xf32>
    %cst_28 = arith.constant dense<0.000000e+00> : vector<8x8xf32>
    %59 = vector.multi_reduction <add>, %58, %cst_28 [2] : vector<8x8x169xf32> to vector<8x8xf32>
    %60 = arith.mulf %53, %59 : vector<8x8xf32>
    %cst_29 = arith.constant dense<0.000000e+00> : vector<8xf32>
    %61 = vector.multi_reduction <add>, %60, %cst_29 [1] : vector<8x8xf32> to vector<8xf32>
    %62 = vector.shape_cast %61 : vector<8xf32> to vector<8x1xf32>
    %c1_30 = arith.constant 1 : index
    %c0_31 = arith.constant 0 : index
    %c0_32 = arith.constant 0 : index
    %63 = vector.load %arg6[%c1_30, %c0_31, %c0_32] : memref<5x8x169xf32, #tpu.memory_space<vmem>>, vector<1x8x169xf32>
    %64 = vector.shape_cast %63 : vector<1x8x169xf32> to vector<8x169xf32>
    %65 = vector.shape_cast %64 : vector<8x169xf32> to vector<1x8x169xf32>
    %66 = vector.broadcast %65 : vector<1x8x169xf32> to vector<8x8x169xf32>
    %67 = arith.mulf %37, %66 : vector<8x8x169xf32>
    %cst_33 = arith.constant dense<0.000000e+00> : vector<8x8xf32>
    %68 = vector.multi_reduction <add>, %67, %cst_33 [2] : vector<8x8x169xf32> to vector<8x8xf32>
    %69 = arith.mulf %53, %68 : vector<8x8xf32>
    %cst_34 = arith.constant dense<0.000000e+00> : vector<8xf32>
    %70 = vector.multi_reduction <add>, %69, %cst_34 [1] : vector<8x8xf32> to vector<8xf32>
    %71 = vector.shape_cast %70 : vector<8xf32> to vector<8x1xf32>
    %c2_35 = arith.constant 2 : index
    %c0_36 = arith.constant 0 : index
    %c0_37 = arith.constant 0 : index
    %72 = vector.load %arg6[%c2_35, %c0_36, %c0_37] : memref<5x8x169xf32, #tpu.memory_space<vmem>>, vector<1x8x169xf32>
    %73 = vector.shape_cast %72 : vector<1x8x169xf32> to vector<8x169xf32>
    %74 = vector.shape_cast %73 : vector<8x169xf32> to vector<1x8x169xf32>
    %75 = vector.broadcast %74 : vector<1x8x169xf32> to vector<8x8x169xf32>
    %76 = arith.mulf %37, %75 : vector<8x8x169xf32>
    %cst_38 = arith.constant dense<0.000000e+00> : vector<8x8xf32>
    %77 = vector.multi_reduction <add>, %76, %cst_38 [2] : vector<8x8x169xf32> to vector<8x8xf32>
    %78 = arith.mulf %53, %77 : vector<8x8xf32>
    %cst_39 = arith.constant dense<0.000000e+00> : vector<8xf32>
    %79 = vector.multi_reduction <add>, %78, %cst_39 [1] : vector<8x8xf32> to vector<8xf32>
    %80 = vector.shape_cast %79 : vector<8xf32> to vector<8x1xf32>
    %c3_40 = arith.constant 3 : index
    %c0_41 = arith.constant 0 : index
    %c0_42 = arith.constant 0 : index
    %81 = vector.load %arg6[%c3_40, %c0_41, %c0_42] : memref<5x8x169xf32, #tpu.memory_space<vmem>>, vector<1x8x169xf32>
    %82 = vector.shape_cast %81 : vector<1x8x169xf32> to vector<8x169xf32>
    %83 = vector.shape_cast %82 : vector<8x169xf32> to vector<1x8x169xf32>
    %84 = vector.broadcast %83 : vector<1x8x169xf32> to vector<8x8x169xf32>
    %85 = arith.mulf %37, %84 : vector<8x8x169xf32>
    %cst_43 = arith.constant dense<0.000000e+00> : vector<8x8xf32>
    %86 = vector.multi_reduction <add>, %85, %cst_43 [2] : vector<8x8x169xf32> to vector<8x8xf32>
    %87 = arith.mulf %53, %86 : vector<8x8xf32>
    %cst_44 = arith.constant dense<0.000000e+00> : vector<8xf32>
    %88 = vector.multi_reduction <add>, %87, %cst_44 [1] : vector<8x8xf32> to vector<8xf32>
    %89 = vector.shape_cast %88 : vector<8xf32> to vector<8x1xf32>
    %c4 = arith.constant 4 : index
    %c0_45 = arith.constant 0 : index
    %c0_46 = arith.constant 0 : index
    %90 = vector.load %arg6[%c4, %c0_45, %c0_46] : memref<5x8x169xf32, #tpu.memory_space<vmem>>, vector<1x8x169xf32>
    %91 = vector.shape_cast %90 : vector<1x8x169xf32> to vector<8x169xf32>
    %92 = vector.shape_cast %91 : vector<8x169xf32> to vector<1x8x169xf32>
    %93 = vector.broadcast %92 : vector<1x8x169xf32> to vector<8x8x169xf32>
    %94 = arith.mulf %37, %93 : vector<8x8x169xf32>
    %cst_47 = arith.constant dense<0.000000e+00> : vector<8x8xf32>
    %95 = vector.multi_reduction <add>, %94, %cst_47 [2] : vector<8x8x169xf32> to vector<8x8xf32>
    %96 = arith.mulf %53, %95 : vector<8x8xf32>
    %cst_48 = arith.constant dense<0.000000e+00> : vector<8xf32>
    %97 = vector.multi_reduction <add>, %96, %cst_48 [1] : vector<8x8xf32> to vector<8xf32>
    %98 = vector.shape_cast %97 : vector<8xf32> to vector<8x1xf32>
    %99 = tpu.concatenate %62, %71, %80, %89, %98 in 1 : vector<8x1xf32>, vector<8x1xf32>, vector<8x1xf32>, vector<8x1xf32>, vector<8x1xf32> -> vector<8x5xf32>
    %c0_49 = arith.constant 0 : index
    %c0_50 = arith.constant 0 : index
    %100 = vector.load %arg7[%c0_49, %c0_50] : memref<1x5xf32, #tpu.memory_space<vmem>>, vector<1x5xf32>
    %101 = vector.broadcast %100 : vector<1x5xf32> to vector<8x5xf32>
    %102 = arith.addf %99, %101 : vector<8x5xf32>
    %cst_51 = arith.constant dense<0xFF800000> : vector<8xf32>
    %103 = vector.multi_reduction <maximumf>, %102, %cst_51 [1] : vector<8x5xf32> to vector<8xf32>
    %104 = vector.shape_cast %103 : vector<8xf32> to vector<8x1xf32>
    %105 = vector.broadcast %104 : vector<8x1xf32> to vector<8x5xf32>
    %106 = arith.subf %102, %105 : vector<8x5xf32>
    %107 = math.exp %106 : vector<8x5xf32>
    %cst_52 = arith.constant dense<0.000000e+00> : vector<8xf32>
    %108 = vector.multi_reduction <add>, %107, %cst_52 [1] : vector<8x5xf32> to vector<8xf32>
    %109 = vector.shape_cast %108 : vector<8xf32> to vector<8x1xf32>
    %110 = tpu.reciprocal %109 : vector<8x1xf32> -> vector<8x1xf32>
    %111 = vector.broadcast %110 : vector<8x1xf32> to vector<8x5xf32>
    %112 = arith.mulf %107, %111 : vector<8x5xf32>
    %c0_53 = arith.constant 0 : index
    %c0_54 = arith.constant 0 : index
    %113 = vector.load %arg8[%c0_53, %c0_54] : memref<8x5xf32, #tpu.memory_space<vmem>>, vector<8x5xf32>
    tpu.vector_store %arg8[%c0_53, %c0_54], %112 {strides = array<i32>} : memref<8x5xf32, #tpu.memory_space<vmem>>, vector<8x5xf32>,
    return
  }
  func.func @transform_0(%arg0: i32) -> (i32, i32, i32) {
    %c0_i32 = arith.constant 0 : i32
    %c0_i32_0 = arith.constant 0 : i32
    %c0_i32_1 = arith.constant 0 : i32
    return %arg0, %c0_i32, %c0_i32_0 : i32, i32, i32
  }
  func.func @transform_1(%arg0: i32) -> (i32, i32, i32) {
    %c0_i32 = arith.constant 0 : i32
    %c0_i32_0 = arith.constant 0 : i32
    %c0_i32_1 = arith.constant 0 : i32
    %c0_i32_2 = arith.constant 0 : i32
    return %c0_i32, %c0_i32_0, %c0_i32_1 : i32, i32, i32
  }
  func.func @transform_2(%arg0: i32) -> (i32, i32) {
    %c0_i32 = arith.constant 0 : i32
    %c0_i32_0 = arith.constant 0 : i32
    %c0_i32_1 = arith.constant 0 : i32
    return %c0_i32, %c0_i32_0 : i32, i32
  }
  func.func @transform_3(%arg0: i32) -> (i32, i32) {
    %c0_i32 = arith.constant 0 : i32
    %c0_i32_0 = arith.constant 0 : i32
    %c0_i32_1 = arith.constant 0 : i32
    return %c0_i32, %c0_i32_0 : i32, i32
  }
  func.func @transform_4(%arg0: i32) -> (i32, i32) {
    %c0_i32 = arith.constant 0 : i32
    %c0_i32_0 = arith.constant 0 : i32
    %c0_i32_1 = arith.constant 0 : i32
    return %c0_i32, %c0_i32_0 : i32, i32
  }
  func.func @transform_5(%arg0: i32) -> (i32, i32, i32) {
    %c0_i32 = arith.constant 0 : i32
    %c0_i32_0 = arith.constant 0 : i32
    %c0_i32_1 = arith.constant 0 : i32
    %c0_i32_2 = arith.constant 0 : i32
    return %c0_i32, %c0_i32_0, %c0_i32_1 : i32, i32, i32
  }
  func.func @transform_6(%arg0: i32) -> (i32, i32) {
    %c0_i32 = arith.constant 0 : i32
    %c0_i32_0 = arith.constant 0 : i32
    %c0_i32_1 = arith.constant 0 : i32
    return %c0_i32, %c0_i32_0 : i32, i32
  }
  func.func @transform_7(%arg0: i32) -> (i32, i32) {
    %c0_i32 = arith.constant 0 : i32
    %c0_i32_0 = arith.constant 0 : i32
    return %arg0, %c0_i32 : i32, i32
  }
}

</mosaic_0001>

<llo_original>
// kernel: se_forward.1
$region0: #{se_forward.1}
  #allocation0 [shape = 'u32[]', space=smem, size = 0x4, offset = 0x4, fixed_abs, tag = 'smem constant byte address 0x4 - core index']
  #allocation1 [shape = 'u32[144,128]{1,0:T(1,128)}', space=vmem, size = 0x12000, scoped, tag = 'internal scratch']
  %s0 = inlined_call_operand.vmem [shape: f32[8,4,169], index: 0, kind: input, shape index: {}]
  %s1 = inlined_call_operand.vmem [shape: f32[4,8,1], index: 1, kind: input, shape index: {}]
  %s2 = inlined_call_operand.vmem [shape: f32[8,1], index: 2, kind: input, shape index: {}]
  %s3 = inlined_call_operand.vmem [shape: f32[8,2], index: 3, kind: input, shape index: {}]
  %s4 = inlined_call_operand.vmem [shape: f32[2,8], index: 4, kind: input, shape index: {}]
  %s5 = inlined_call_operand.vmem [shape: f32[5,8,169], index: 5, kind: input, shape index: {}]
  %s6 = inlined_call_operand.vmem [shape: f32[1,5], index: 6, kind: input, shape index: {}]
  %s7 = inlined_call_operand.vmem [shape: f32[8,5], index: 7, kind: output, shape index: {}]
  %s8 = sld [smem:[#allocation0]]
  $region38: #{se_forward.1} parent=0
    _
  %s10 = ssub.s32 1, %s8
  %s11 = scalar_select 0, %s10, %s8
  // Predicated region
  $region2: #{se_forward.1} parent=0 // pred_check
    _
  $region3: #{se_forward.1} parent=0 // pred_check_branch
    %13 = sbr.rel (0) target = $region5
  $region4: #{se_forward.1} parent=0 // pred_region
    _
  $region5: #{se_forward.1} parent=0 // pred_fallthru
    _
  // Predicated region
  $region6: #{se_forward.1} parent=0 // pred_check
    _
  $region7: #{se_forward.1} parent=0 // pred_check_branch
    %15 = sbr.rel (0) target = $region9
  $region8: #{se_forward.1} parent=0 // pred_region
    _
  $region9: #{se_forward.1} parent=0 // pred_fallthru
    _
  // Predicated region
  $region10: #{se_forward.1} parent=0 // pred_check
    _
  $region11: #{se_forward.1} parent=0 // pred_check_branch
    %17 = sbr.rel (0) target = $region13
  $region12: #{se_forward.1} parent=0 // pred_region
    _
  $region13: #{se_forward.1} parent=0 // pred_fallthru
    _
  // Predicated region
  $region14: #{se_forward.1} parent=0 // pred_check
    _
  $region15: #{se_forward.1} parent=0 // pred_check_branch
    %19 = sbr.rel (0) target = $region17
  $region16: #{se_forward.1} parent=0 // pred_region
    _
  $region17: #{se_forward.1} parent=0 // pred_fallthru
    _
  // Predicated region
  $region18: #{se_forward.1} parent=0 // pred_check
    _
  $region19: #{se_forward.1} parent=0 // pred_check_branch
    %21 = sbr.rel (0) target = $region21
  $region20: #{se_forward.1} parent=0 // pred_region
    _
  $region21: #{se_forward.1} parent=0 // pred_fallthru
    _
  // Predicated region
  $region22: #{se_forward.1} parent=0 // pred_check
    _
  $region23: #{se_forward.1} parent=0 // pred_check_branch
    %23 = sbr.rel (0) target = $region25
  $region24: #{se_forward.1} parent=0 // pred_region
    _
  $region25: #{se_forward.1} parent=0 // pred_fallthru
    _
  // Predicated region
  $region26: #{se_forward.1} parent=0 // pred_check
    _
  $region27: #{se_forward.1} parent=0 // pred_check_branch
    %25 = sbr.rel (0) target = $region29
  $region28: #{se_forward.1} parent=0 // pred_region
    _
  $region29: #{se_forward.1} parent=0 // pred_fallthru
    _
  %v26 = vld [vmem:[%s0] sm:$0xff]
  %v27 = vld [vmem:[%s0 + $0x8] sm:$0xff]
  %v28 = vld [vmem:[%s0 + $0x10] sm:$0xff]
  %v29 = vld [vmem:[%s0 + $0x18] sm:$0xff]
  %v30 = vld [vmem:[%s0 + $0x20] sm:$0xff]
  %v31 = vld [vmem:[%s0 + $0x28] sm:$0xff]
  %v32 = vld [vmem:[%s0 + $0x30] sm:$0xff]
  %v33 = vld [vmem:[%s0 + $0x38] sm:$0xff]
  %v34 = vld [vmem:[%s1] sm:$0xff]
  %36 = vset.pattern.permute.xlu0 0
  %37 = vperm.xlu0 %36, %v34
  %v38 = vpop.permute.xlu0 %37
  %v48 = vlaneseq
  %v49 = vshrl.u32 %v48, 7
  %v50 = vsub.s32 0, %v49
  %v51 = vrot.slane %v26, %v50
  %v52 = vlaneseq
  %v53 = vshrl.u32 %v52, 7
  %v54 = vsub.s32 4, %v53
  %v55 = vrot.slane %v26, %v54
  %v56 = vlaneseq
  %v57 = vshrl.u32 %v56, 7
  %v58 = vsub.s32 0, %v57
  %v59 = vrot.slane %v27, %v58
  %v60 = vlaneseq
  %v61 = vshrl.u32 %v60, 7
  %v62 = vsub.s32 4, %v61
  %v63 = vrot.slane %v27, %v62
  %v64 = vlaneseq
  %v65 = vshrl.u32 %v64, 7
  %v66 = vsub.s32 0, %v65
  %v67 = vrot.slane %v28, %v66
  %v68 = vlaneseq
  %v69 = vshrl.u32 %v68, 7
  %v70 = vsub.s32 4, %v69
  %v71 = vrot.slane %v28, %v70
  %v72 = vlaneseq
  %v73 = vshrl.u32 %v72, 7
  %v74 = vsub.s32 0, %v73
  %v75 = vrot.slane %v29, %v74
  %v76 = vlaneseq
  %v77 = vshrl.u32 %v76, 7
  %v78 = vsub.s32 4, %v77
  %v79 = vrot.slane %v29, %v78
  %v80 = vlaneseq
  %v81 = vshrl.u32 %v80, 7
  %v82 = vsub.s32 0, %v81
  %v83 = vrot.slane %v30, %v82
  %v84 = vlaneseq
  %v85 = vshrl.u32 %v84, 7
  %v86 = vsub.s32 4, %v85
  %v87 = vrot.slane %v30, %v86
  %v88 = vlaneseq
  %v89 = vshrl.u32 %v88, 7
  %v90 = vsub.s32 0, %v89
  %v91 = vrot.slane %v31, %v90
  %v92 = vlaneseq
  %v93 = vshrl.u32 %v92, 7
  %v94 = vsub.s32 4, %v93
  %v95 = vrot.slane %v31, %v94
  %v96 = vlaneseq
  %v97 = vshrl.u32 %v96, 7
  %v98 = vsub.s32 0, %v97
  %v99 = vrot.slane %v32, %v98
  %v100 = vlaneseq
  %v101 = vshrl.u32 %v100, 7
  %v102 = vsub.s32 4, %v101
  %v103 = vrot.slane %v32, %v102
  %v104 = vlaneseq
  %v105 = vshrl.u32 %v104, 7
  %v106 = vsub.s32 0, %v105
  %v107 = vrot.slane %v33, %v106
  %v108 = vlaneseq
  %v109 = vshrl.u32 %v108, 7
  %v110 = vsub.s32 4, %v109
  %v111 = vrot.slane %v33, %v110
  %v128 = vlaneseq
  %v129 = vshrl.u32 %v128, 7
  %v130 = vsub.s32 0, %v129
  %v131 = vrot.slane %v51, %v130
  %v132 = vlaneseq
  %v133 = vshrl.u32 %v132, 7
  %v134 = vsub.s32 0, %v133
  %v135 = vrot.slane %v55, %v134
  %v136 = vlaneseq
  %v137 = vshrl.u32 %v136, 7
  %v138 = vsub.s32 0, %v137
  %v139 = vrot.slane %v59, %v138
  %v140 = vlaneseq
  %v141 = vshrl.u32 %v140, 7
  %v142 = vsub.s32 0, %v141
  %v143 = vrot.slane %v63, %v142
  %v144 = vlaneseq
  %v145 = vshrl.u32 %v144, 7
  %v146 = vsub.s32 0, %v145
  %v147 = vrot.slane %v67, %v146
  %v148 = vlaneseq
  %v149 = vshrl.u32 %v148, 7
  %v150 = vsub.s32 0, %v149
  %v151 = vrot.slane %v71, %v150
  %v152 = vlaneseq
  %v153 = vshrl.u32 %v152, 7
  %v154 = vsub.s32 0, %v153
  %v155 = vrot.slane %v75, %v154
  %v156 = vlaneseq
  %v157 = vshrl.u32 %v156, 7
  %v158 = vsub.s32 0, %v157
  %v159 = vrot.slane %v79, %v158
  %v160 = vlaneseq
  %v161 = vshrl.u32 %v160, 7
  %v162 = vsub.s32 0, %v161
  %v163 = vrot.slane %v83, %v162
  %v164 = vlaneseq
  %v165 = vshrl.u32 %v164, 7
  %v166 = vsub.s32 0, %v165
  %v167 = vrot.slane %v87, %v166
  %v168 = vlaneseq
  %v169 = vshrl.u32 %v168, 7
  %v170 = vsub.s32 0, %v169
  %v171 = vrot.slane %v91, %v170
  %v172 = vlaneseq
  %v173 = vshrl.u32 %v172, 7
  %v174 = vsub.s32 0, %v173
  %v175 = vrot.slane %v95, %v174
  %v176 = vlaneseq
  %v177 = vshrl.u32 %v176, 7
  %v178 = vsub.s32 0, %v177
  %v179 = vrot.slane %v99, %v178
  %v180 = vlaneseq
  %v181 = vshrl.u32 %v180, 7
  %v182 = vsub.s32 0, %v181
  %v183 = vrot.slane %v103, %v182
  %v184 = vlaneseq
  %v185 = vshrl.u32 %v184, 7
  %v186 = vsub.s32 0, %v185
  %v187 = vrot.slane %v107, %v186
  %v188 = vlaneseq
  %v189 = vshrl.u32 %v188, 7
  %v190 = vsub.s32 0, %v189
  %v191 = vrot.slane %v111, %v190
  %v192 = vmul.f32 %v38, %v131
  %v193 = vmul.f32 %v38, %v135
  %v194 = vmul.f32 %v38, %v139
  %v195 = vmul.f32 %v38, %v143
  %v196 = vmul.f32 %v38, %v147
  %v197 = vmul.f32 %v38, %v151
  %v198 = vmul.f32 %v38, %v155
  %v199 = vmul.f32 %v38, %v159
  %v200 = vmul.f32 %v38, %v163
  %v201 = vmul.f32 %v38, %v167
  %v202 = vmul.f32 %v38, %v171
  %v203 = vmul.f32 %v38, %v175
  %v204 = vmul.f32 %v38, %v179
  %v205 = vmul.f32 %v38, %v183
  %v206 = vmul.f32 %v38, %v187
  %v207 = vmul.f32 %v38, %v191
  %s208 = scalar_lea.vmem %s1, 8
  %v209 = vld [vmem:[%s208] sm:$0xff]
  %211 = vset.pattern.permute.xlu0 0
  %212 = vperm.xlu0 %211, %v209
  %v213 = vpop.permute.xlu0 %212
  %v215 = vlaneseq
  %v216 = vshrl.u32 %v215, 7
  %v217 = vsub.s32 1, %v216
  %v218 = vrot.slane %v26, %v217
  %v219 = vlaneseq
  %v220 = vshrl.u32 %v219, 7
  %v221 = vsub.s32 5, %v220
  %v222 = vrot.slane %v26, %v221
  %v223 = vlaneseq
  %v224 = vshrl.u32 %v223, 7
  %v225 = vsub.s32 1, %v224
  %v226 = vrot.slane %v27, %v225
  %v227 = vlaneseq
  %v228 = vshrl.u32 %v227, 7
  %v229 = vsub.s32 5, %v228
  %v230 = vrot.slane %v27, %v229
  %v231 = vlaneseq
  %v232 = vshrl.u32 %v231, 7
  %v233 = vsub.s32 1, %v232
  %v234 = vrot.slane %v28, %v233
  %v235 = vlaneseq
  %v236 = vshrl.u32 %v235, 7
  %v237 = vsub.s32 5, %v236
  %v238 = vrot.slane %v28, %v237
  %v239 = vlaneseq
  %v240 = vshrl.u32 %v239, 7
  %v241 = vsub.s32 1, %v240
  %v242 = vrot.slane %v29, %v241
  %v243 = vlaneseq
  %v244 = vshrl.u32 %v243, 7
  %v245 = vsub.s32 5, %v244
  %v246 = vrot.slane %v29, %v245
  %v247 = vlaneseq
  %v248 = vshrl.u32 %v247, 7
  %v249 = vsub.s32 1, %v248
  %v250 = vrot.slane %v30, %v249
  %v251 = vlaneseq
  %v252 = vshrl.u32 %v251, 7
  %v253 = vsub.s32 5, %v252
  %v254 = vrot.slane %v30, %v253
  %v255 = vlaneseq
  %v256 = vshrl.u32 %v255, 7
  %v257 = vsub.s32 1, %v256
  %v258 = vrot.slane %v31, %v257
  %v259 = vlaneseq
  %v260 = vshrl.u32 %v259, 7
  %v261 = vsub.s32 5, %v260
  %v262 = vrot.slane %v31, %v261
  %v263 = vlaneseq
  %v264 = vshrl.u32 %v263, 7
  %v265 = vsub.s32 1, %v264
  %v266 = vrot.slane %v32, %v265
  %v267 = vlaneseq
  %v268 = vshrl.u32 %v267, 7
  %v269 = vsub.s32 5, %v268
  %v270 = vrot.slane %v32, %v269
  %v271 = vlaneseq
  %v272 = vshrl.u32 %v271, 7
  %v273 = vsub.s32 1, %v272
  %v274 = vrot.slane %v33, %v273
  %v275 = vlaneseq
  %v276 = vshrl.u32 %v275, 7
  %v277 = vsub.s32 5, %v276
  %v278 = vrot.slane %v33, %v277
  %v295 = vlaneseq
  %v296 = vshrl.u32 %v295, 7
  %v297 = vsub.s32 1, %v296
  %v298 = vrot.slane %v218, %v297
  %v299 = vlaneseq
  %v300 = vshrl.u32 %v299, 7
  %v301 = vsub.s32 1, %v300
  %v302 = vrot.slane %v222, %v301
  %v303 = vlaneseq
  %v304 = vshrl.u32 %v303, 7
  %v305 = vsub.s32 1, %v304
  %v306 = vrot.slane %v226, %v305
  %v307 = vlaneseq
  %v308 = vshrl.u32 %v307, 7
  %v309 = vsub.s32 1, %v308
  %v310 = vrot.slane %v230, %v309
  %v311 = vlaneseq
  %v312 = vshrl.u32 %v311, 7
  %v313 = vsub.s32 1, %v312
  %v314 = vrot.slane %v234, %v313
  %v315 = vlaneseq
  %v316 = vshrl.u32 %v315, 7
  %v317 = vsub.s32 1, %v316
  %v318 = vrot.slane %v238, %v317
  %v319 = vlaneseq
  %v320 = vshrl.u32 %v319, 7
  %v321 = vsub.s32 1, %v320
  %v322 = vrot.slane %v242, %v321
  %v323 = vlaneseq
  %v324 = vshrl.u32 %v323, 7
  %v325 = vsub.s32 1, %v324
  %v326 = vrot.slane %v246, %v325
  %v327 = vlaneseq
  %v328 = vshrl.u32 %v327, 7
  %v329 = vsub.s32 1, %v328
  %v330 = vrot.slane %v250, %v329
  %v331 = vlaneseq
  %v332 = vshrl.u32 %v331, 7
  %v333 = vsub.s32 1, %v332
  %v334 = vrot.slane %v254, %v333
  %v335 = vlaneseq
  %v336 = vshrl.u32 %v335, 7
  %v337 = vsub.s32 1, %v336
  %v338 = vrot.slane %v258, %v337
  %v339 = vlaneseq
  %v340 = vshrl.u32 %v339, 7
  %v341 = vsub.s32 1, %v340
  %v342 = vrot.slane %v262, %v341
  %v343 = vlaneseq
  %v344 = vshrl.u32 %v343, 7
  %v345 = vsub.s32 1, %v344
  %v346 = vrot.slane %v266, %v345
  %v347 = vlaneseq
  %v348 = vshrl.u32 %v347, 7
  %v349 = vsub.s32 1, %v348
  %v350 = vrot.slane %v270, %v349
  %v351 = vlaneseq
  %v352 = vshrl.u32 %v351, 7
  %v353 = vsub.s32 1, %v352
  %v354 = vrot.slane %v274, %v353
  %v355 = vlaneseq
  %v356 = vshrl.u32 %v355, 7
  %v357 = vsub.s32 1, %v356
  %v358 = vrot.slane %v278, %v357
  %v359 = vmul.f32 %v213, %v298
  %v360 = vmul.f32 %v213, %v302
  %v361 = vmul.f32 %v213, %v306
  %v362 = vmul.f32 %v213, %v310
  %v363 = vmul.f32 %v213, %v314
  %v364 = vmul.f32 %v213, %v318
  %v365 = vmul.f32 %v213, %v322
  %v366 = vmul.f32 %v213, %v326
  %v367 = vmul.f32 %v213, %v330
  %v368 = vmul.f32 %v213, %v334
  %v369 = vmul.f32 %v213, %v338
  %v370 = vmul.f32 %v213, %v342
  %v371 = vmul.f32 %v213, %v346
  %v372 = vmul.f32 %v213, %v350
  %v373 = vmul.f32 %v213, %v354
  %v374 = vmul.f32 %v213, %v358
  %v375 = vadd.f32 %v192, %v359
  %v376 = vadd.f32 %v193, %v360
  %v377 = vadd.f32 %v194, %v361
  %v378 = vadd.f32 %v195, %v362
  %v379 = vadd.f32 %v196, %v363
  %v380 = vadd.f32 %v197, %v364
  %v381 = vadd.f32 %v198, %v365
  %v382 = vadd.f32 %v199, %v366
  %v383 = vadd.f32 %v200, %v367
  %v384 = vadd.f32 %v201, %v368
  %v385 = vadd.f32 %v202, %v369
  %v386 = vadd.f32 %v203, %v370
  %v387 = vadd.f32 %v204, %v371
  %v388 = vadd.f32 %v205, %v372
  %v389 = vadd.f32 %v206, %v373
  %v390 = vadd.f32 %v207, %v374
  %s391 = scalar_lea.vmem %s1, 16
  %v392 = vld [vmem:[%s391] sm:$0xff]
  %394 = vset.pattern.permute.xlu0 0
  %395 = vperm.xlu0 %394, %v392
  %v396 = vpop.permute.xlu0 %395
  %v398 = vlaneseq
  %v399 = vshrl.u32 %v398, 7
  %v400 = vsub.s32 2, %v399
  %v401 = vrot.slane %v26, %v400
  %v402 = vlaneseq
  %v403 = vshrl.u32 %v402, 7
  %v404 = vsub.s32 6, %v403
  %v405 = vrot.slane %v26, %v404
  %v406 = vlaneseq
  %v407 = vshrl.u32 %v406, 7
  %v408 = vsub.s32 2, %v407
  %v409 = vrot.slane %v27, %v408
  %v410 = vlaneseq
  %v411 = vshrl.u32 %v410, 7
  %v412 = vsub.s32 6, %v411
  %v413 = vrot.slane %v27, %v412
  %v414 = vlaneseq
  %v415 = vshrl.u32 %v414, 7
  %v416 = vsub.s32 2, %v415
  %v417 = vrot.slane %v28, %v416
  %v418 = vlaneseq
  %v419 = vshrl.u32 %v418, 7
  %v420 = vsub.s32 6, %v419
  %v421 = vrot.slane %v28, %v420
  %v422 = vlaneseq
  %v423 = vshrl.u32 %v422, 7
  %v424 = vsub.s32 2, %v423
  %v425 = vrot.slane %v29, %v424
  %v426 = vlaneseq
  %v427 = vshrl.u32 %v426, 7
  %v428 = vsub.s32 6, %v427
  %v429 = vrot.slane %v29, %v428
  %v430 = vlaneseq
  %v431 = vshrl.u32 %v430, 7
  %v432 = vsub.s32 2, %v431
  %v433 = vrot.slane %v30, %v432
  %v434 = vlaneseq
  %v435 = vshrl.u32 %v434, 7
  %v436 = vsub.s32 6, %v435
  %v437 = vrot.slane %v30, %v436
  %v438 = vlaneseq
  %v439 = vshrl.u32 %v438, 7
  %v440 = vsub.s32 2, %v439
  %v441 = vrot.slane %v31, %v440
  %v442 = vlaneseq
  %v443 = vshrl.u32 %v442, 7
  %v444 = vsub.s32 6, %v443
  %v445 = vrot.slane %v31, %v444
  %v446 = vlaneseq
  %v447 = vshrl.u32 %v446, 7
  %v448 = vsub.s32 2, %v447
  %v449 = vrot.slane %v32, %v448
  %v450 = vlaneseq
  %v451 = vshrl.u32 %v450, 7
  %v452 = vsub.s32 6, %v451
  %v453 = vrot.slane %v32, %v452
  %v454 = vlaneseq
  %v455 = vshrl.u32 %v454, 7
  %v456 = vsub.s32 2, %v455
  %v457 = vrot.slane %v33, %v456
  %v458 = vlaneseq
  %v459 = vshrl.u32 %v458, 7
  %v460 = vsub.s32 6, %v459
  %v461 = vrot.slane %v33, %v460
  %v478 = vlaneseq
  %v479 = vshrl.u32 %v478, 7
  %v480 = vsub.s32 2, %v479
  %v481 = vrot.slane %v401, %v480
  %v482 = vlaneseq
  %v483 = vshrl.u32 %v482, 7
  %v484 = vsub.s32 2, %v483
  %v485 = vrot.slane %v405, %v484
  %v486 = vlaneseq
  %v487 = vshrl.u32 %v486, 7
  %v488 = vsub.s32 2, %v487
  %v489 = vrot.slane %v409, %v488
  %v490 = vlaneseq
  %v491 = vshrl.u32 %v490, 7
  %v492 = vsub.s32 2, %v491
  %v493 = vrot.slane %v413, %v492
  %v494 = vlaneseq
  %v495 = vshrl.u32 %v494, 7
  %v496 = vsub.s32 2, %v495
  %v497 = vrot.slane %v417, %v496
  %v498 = vlaneseq
  %v499 = vshrl.u32 %v498, 7
  %v500 = vsub.s32 2, %v499
  %v501 = vrot.slane %v421, %v500
  %v502 = vlaneseq
  %v503 = vshrl.u32 %v502, 7
  %v504 = vsub.s32 2, %v503
  %v505 = vrot.slane %v425, %v504
  %v506 = vlaneseq
  %v507 = vshrl.u32 %v506, 7
  %v508 = vsub.s32 2, %v507
  %v509 = vrot.slane %v429, %v508
  %v510 = vlaneseq
  %v511 = vshrl.u32 %v510, 7
  %v512 = vsub.s32 2, %v511
  %v513 = vrot.slane %v433, %v512
  %v514 = vlaneseq
  %v515 = vshrl.u32 %v514, 7
  %v516 = vsub.s32 2, %v515
  %v517 = vrot.slane %v437, %v516
  %v518 = vlaneseq
  %v519 = vshrl.u32 %v518, 7
  %v520 = vsub.s32 2, %v519
  %v521 = vrot.slane %v441, %v520
  %v522 = vlaneseq
  %v523 = vshrl.u32 %v522, 7
  %v524 = vsub.s32 2, %v523
  %v525 = vrot.slane %v445, %v524
  %v526 = vlaneseq
  %v527 = vshrl.u32 %v526, 7
  %v528 = vsub.s32 2, %v527
  %v529 = vrot.slane %v449, %v528
  %v530 = vlaneseq
  %v531 = vshrl.u32 %v530, 7
  %v532 = vsub.s32 2, %v531
  %v533 = vrot.slane %v453, %v532
  %v534 = vlaneseq
  %v535 = vshrl.u32 %v534, 7
  %v536 = vsub.s32 2, %v535
  %v537 = vrot.slane %v457, %v536
  %v538 = vlaneseq
  %v539 = vshrl.u32 %v538, 7
  %v540 = vsub.s32 2, %v539
  %v541 = vrot.slane %v461, %v540
  %v542 = vmul.f32 %v396, %v481
  %v543 = vmul.f32 %v396, %v485
  %v544 = vmul.f32 %v396, %v489
  %v545 = vmul.f32 %v396, %v493
  %v546 = vmul.f32 %v396, %v497
  %v547 = vmul.f32 %v396, %v501
  %v548 = vmul.f32 %v396, %v505
  %v549 = vmul.f32 %v396, %v509
  %v550 = vmul.f32 %v396, %v513
  %v551 = vmul.f32 %v396, %v517
  %v552 = vmul.f32 %v396, %v521
  %v553 = vmul.f32 %v396, %v525
  %v554 = vmul.f32 %v396, %v529
  %v555 = vmul.f32 %v396, %v533
  %v556 = vmul.f32 %v396, %v537
  %v557 = vmul.f32 %v396, %v541
  %v558 = vadd.f32 %v375, %v542
  %v559 = vadd.f32 %v376, %v543
  %v560 = vadd.f32 %v377, %v544
  %v561 = vadd.f32 %v378, %v545
  %v562 = vadd.f32 %v379, %v546
  %v563 = vadd.f32 %v380, %v547
  %v564 = vadd.f32 %v381, %v548
  %v565 = vadd.f32 %v382, %v549
  %v566 = vadd.f32 %v383, %v550
  %v567 = vadd.f32 %v384, %v551
  %v568 = vadd.f32 %v385, %v552
  %v569 = vadd.f32 %v386, %v553
  %v570 = vadd.f32 %v387, %v554
  %v571 = vadd.f32 %v388, %v555
  %v572 = vadd.f32 %v389, %v556
  %v573 = vadd.f32 %v390, %v557
  %s574 = scalar_lea.vmem %s1, 24
  %v575 = vld [vmem:[%s574] sm:$0xff]
  %577 = vset.pattern.permute.xlu0 0
  %578 = vperm.xlu0 %577, %v575
  %v579 = vpop.permute.xlu0 %578
  %v581 = vlaneseq
  %v582 = vshrl.u32 %v581, 7
  %v583 = vsub.s32 3, %v582
  %v584 = vrot.slane %v26, %v583
  %v585 = vlaneseq
  %v586 = vshrl.u32 %v585, 7
  %v587 = vsub.s32 7, %v586
  %v588 = vrot.slane %v26, %v587
  %v589 = vlaneseq
  %v590 = vshrl.u32 %v589, 7
  %v591 = vsub.s32 3, %v590
  %v592 = vrot.slane %v27, %v591
  %v593 = vlaneseq
  %v594 = vshrl.u32 %v593, 7
  %v595 = vsub.s32 7, %v594
  %v596 = vrot.slane %v27, %v595
  %v597 = vlaneseq
  %v598 = vshrl.u32 %v597, 7
  %v599 = vsub.s32 3, %v598
  %v600 = vrot.slane %v28, %v599
  %v601 = vlaneseq
  %v602 = vshrl.u32 %v601, 7
  %v603 = vsub.s32 7, %v602
  %v604 = vrot.slane %v28, %v603
  %v605 = vlaneseq
  %v606 = vshrl.u32 %v605, 7
  %v607 = vsub.s32 3, %v606
  %v608 = vrot.slane %v29, %v607
  %v609 = vlaneseq
  %v610 = vshrl.u32 %v609, 7
  %v611 = vsub.s32 7, %v610
  %v612 = vrot.slane %v29, %v611
  %v613 = vlaneseq
  %v614 = vshrl.u32 %v613, 7
  %v615 = vsub.s32 3, %v614
  %v616 = vrot.slane %v30, %v615
  %v617 = vlaneseq
  %v618 = vshrl.u32 %v617, 7
  %v619 = vsub.s32 7, %v618
  %v620 = vrot.slane %v30, %v619
  %v621 = vlaneseq
  %v622 = vshrl.u32 %v621, 7
  %v623 = vsub.s32 3, %v622
  %v624 = vrot.slane %v31, %v623
  %v625 = vlaneseq
  %v626 = vshrl.u32 %v625, 7
  %v627 = vsub.s32 7, %v626
  %v628 = vrot.slane %v31, %v627
  %v629 = vlaneseq
  %v630 = vshrl.u32 %v629, 7
  %v631 = vsub.s32 3, %v630
  %v632 = vrot.slane %v32, %v631
  %v633 = vlaneseq
  %v634 = vshrl.u32 %v633, 7
  %v635 = vsub.s32 7, %v634
  %v636 = vrot.slane %v32, %v635
  %v637 = vlaneseq
  %v638 = vshrl.u32 %v637, 7
  %v639 = vsub.s32 3, %v638
  %v640 = vrot.slane %v33, %v639
  %v641 = vlaneseq
  %v642 = vshrl.u32 %v641, 7
  %v643 = vsub.s32 7, %v642
  %v644 = vrot.slane %v33, %v643
  %v661 = vlaneseq
  %v662 = vshrl.u32 %v661, 7
  %v663 = vsub.s32 3, %v662
  %v664 = vrot.slane %v584, %v663
  %v665 = vlaneseq
  %v666 = vshrl.u32 %v665, 7
  %v667 = vsub.s32 3, %v666
  %v668 = vrot.slane %v588, %v667
  %v669 = vlaneseq
  %v670 = vshrl.u32 %v669, 7
  %v671 = vsub.s32 3, %v670
  %v672 = vrot.slane %v592, %v671
  %v673 = vlaneseq
  %v674 = vshrl.u32 %v673, 7
  %v675 = vsub.s32 3, %v674
  %v676 = vrot.slane %v596, %v675
  %v677 = vlaneseq
  %v678 = vshrl.u32 %v677, 7
  %v679 = vsub.s32 3, %v678
  %v680 = vrot.slane %v600, %v679
  %v681 = vlaneseq
  %v682 = vshrl.u32 %v681, 7
  %v683 = vsub.s32 3, %v682
  %v684 = vrot.slane %v604, %v683
  %v685 = vlaneseq
  %v686 = vshrl.u32 %v685, 7
  %v687 = vsub.s32 3, %v686
  %v688 = vrot.slane %v608, %v687
  %v689 = vlaneseq
  %v690 = vshrl.u32 %v689, 7
  %v691 = vsub.s32 3, %v690
  %v692 = vrot.slane %v612, %v691
  %v693 = vlaneseq
  %v694 = vshrl.u32 %v693, 7
  %v695 = vsub.s32 3, %v694
  %v696 = vrot.slane %v616, %v695
  %v697 = vlaneseq
  %v698 = vshrl.u32 %v697, 7
  %v699 = vsub.s32 3, %v698
  %v700 = vrot.slane %v620, %v699
  %v701 = vlaneseq
  %v702 = vshrl.u32 %v701, 7
  %v703 = vsub.s32 3, %v702
  %v704 = vrot.slane %v624, %v703
  %v705 = vlaneseq
  %v706 = vshrl.u32 %v705, 7
  %v707 = vsub.s32 3, %v706
  %v708 = vrot.slane %v628, %v707
  %v709 = vlaneseq
  %v710 = vshrl.u32 %v709, 7
  %v711 = vsub.s32 3, %v710
  %v712 = vrot.slane %v632, %v711
  %v713 = vlaneseq
  %v714 = vshrl.u32 %v713, 7
  %v715 = vsub.s32 3, %v714
  %v716 = vrot.slane %v636, %v715
  %v717 = vlaneseq
  %v718 = vshrl.u32 %v717, 7
  %v719 = vsub.s32 3, %v718
  %v720 = vrot.slane %v640, %v719
  %v721 = vlaneseq
  %v722 = vshrl.u32 %v721, 7
  %v723 = vsub.s32 3, %v722
  %v724 = vrot.slane %v644, %v723
  %v725 = vmul.f32 %v579, %v664
  %v726 = vmul.f32 %v579, %v668
  %v727 = vmul.f32 %v579, %v672
  %v728 = vmul.f32 %v579, %v676
  %v729 = vmul.f32 %v579, %v680
  %v730 = vmul.f32 %v579, %v684
  %v731 = vmul.f32 %v579, %v688
  %v732 = vmul.f32 %v579, %v692
  %v733 = vmul.f32 %v579, %v696
  %v734 = vmul.f32 %v579, %v700
  %v735 = vmul.f32 %v579, %v704
  %v736 = vmul.f32 %v579, %v708
  %v737 = vmul.f32 %v579, %v712
  %v738 = vmul.f32 %v579, %v716
  %v739 = vmul.f32 %v579, %v720
  %v740 = vmul.f32 %v579, %v724
  %v741 = vadd.f32 %v558, %v725
  %v742 = vadd.f32 %v559, %v726
  %v743 = vadd.f32 %v560, %v727
  %v744 = vadd.f32 %v561, %v728
  %v745 = vadd.f32 %v562, %v729
  %v746 = vadd.f32 %v563, %v730
  %v747 = vadd.f32 %v564, %v731
  %v748 = vadd.f32 %v565, %v732
  %v749 = vadd.f32 %v566, %v733
  %v750 = vadd.f32 %v567, %v734
  %v751 = vadd.f32 %v568, %v735
  %v752 = vadd.f32 %v569, %v736
  %v753 = vadd.f32 %v570, %v737
  %v754 = vadd.f32 %v571, %v738
  %v755 = vadd.f32 %v572, %v739
  %v756 = vadd.f32 %v573, %v740
  %v757 = vld [vmem:[%s2] sm:$0xff]
  %759 = vset.pattern.permute.xlu0 0
  %760 = vperm.xlu0 %759, %v757
  %v761 = vpop.permute.xlu0 %760
  %v763 = vadd.f32 %v741, %v761
  %v764 = vadd.f32 %v742, %v761
  %v765 = vadd.f32 %v743, %v761
  %v766 = vadd.f32 %v744, %v761
  %v767 = vadd.f32 %v745, %v761
  %v768 = vadd.f32 %v746, %v761
  %v769 = vadd.f32 %v747, %v761
  %v770 = vadd.f32 %v748, %v761
  %v771 = vadd.f32 %v749, %v761
  %v772 = vadd.f32 %v750, %v761
  %v773 = vadd.f32 %v751, %v761
  %v774 = vadd.f32 %v752, %v761
  %v775 = vadd.f32 %v753, %v761
  %v776 = vadd.f32 %v754, %v761
  %v777 = vadd.f32 %v755, %v761
  %v778 = vadd.f32 %v756, %v761
  %v779 = vmax.f32 %v763, 0.0
  %v780 = vmax.f32 %v764, 0.0
  %v781 = vmax.f32 %v765, 0.0
  %v782 = vmax.f32 %v766, 0.0
  %v783 = vmax.f32 %v767, 0.0
  %v784 = vmax.f32 %v768, 0.0
  %v785 = vmax.f32 %v769, 0.0
  %v786 = vmax.f32 %v770, 0.0
  %v787 = vmax.f32 %v771, 0.0
  %v788 = vmax.f32 %v772, 0.0
  %v789 = vmax.f32 %v773, 0.0
  %v790 = vmax.f32 %v774, 0.0
  %v791 = vmax.f32 %v775, 0.0
  %v792 = vmax.f32 %v776, 0.0
  %v793 = vmax.f32 %v777, 0.0
  %v794 = vmax.f32 %v778, 0.0
  %vm795 = vcmask 334848
  %v796 = vsel %vm795, %v780, 0.0
  %v797 = vadd.f32 %v779, %v796
  %798 = vadd.xlane.f32.xlu0 %v797
  %v799 = vpop.xlane.xlu0 %798
  %v800 = vsel %vm795, %v782, 0.0
  %v801 = vadd.f32 %v781, %v800
  %802 = vadd.xlane.f32.xlu0 %v801
  %v803 = vpop.xlane.xlu0 %802
  %v804 = vsel %vm795, %v784, 0.0
  %v805 = vadd.f32 %v783, %v804
  %806 = vadd.xlane.f32.xlu0 %v805
  %v807 = vpop.xlane.xlu0 %806
  %v808 = vsel %vm795, %v786, 0.0
  %v809 = vadd.f32 %v785, %v808
  %810 = vadd.xlane.f32.xlu0 %v809
  %v811 = vpop.xlane.xlu0 %810
  %v812 = vsel %vm795, %v788, 0.0
  %v813 = vadd.f32 %v787, %v812
  %814 = vadd.xlane.f32.xlu0 %v813
  %v815 = vpop.xlane.xlu0 %814
  %v816 = vsel %vm795, %v790, 0.0
  %v817 = vadd.f32 %v789, %v816
  %818 = vadd.xlane.f32.xlu0 %v817
  %v819 = vpop.xlane.xlu0 %818
  %v820 = vsel %vm795, %v792, 0.0
  %v821 = vadd.f32 %v791, %v820
  %822 = vadd.xlane.f32.xlu0 %v821
  %v823 = vpop.xlane.xlu0 %822
  %v824 = vsel %vm795, %v794, 0.0
  %v825 = vadd.f32 %v793, %v824
  %826 = vadd.xlane.f32.xlu0 %v825
  %v827 = vpop.xlane.xlu0 %826
  %v828 = vmul.f32 %v799, 0.00591716
  %v829 = vmul.f32 %v803, 0.00591716
  %v830 = vmul.f32 %v807, 0.00591716
  %v831 = vmul.f32 %v811, 0.00591716
  %v832 = vmul.f32 %v815, 0.00591716
  %v833 = vmul.f32 %v819, 0.00591716
  %v834 = vmul.f32 %v823, 0.00591716
  %v835 = vmul.f32 %v827, 0.00591716
  %v836 = vld [vmem:[%s3] sm:$0xff]
  %v845 = vlaneseq
  %v846 = vand.u32 %v845, 127
  %v847 = vlaneseq
  %v848 = vshrl.u32 %v847, 7
  %v849 = vsub.s32 %v846, %v848
  %v850 = vrot.slane %v828, %v849
  %v851 = vlaneseq
  %v852 = vshrl.u32 %v851, 7
  %v853 = vsub.s32 %v846, %v852
  %v854 = vrot.slane %v829, %v853
  %v855 = vlaneseq
  %v856 = vshrl.u32 %v855, 7
  %v857 = vsub.s32 %v846, %v856
  %v858 = vrot.slane %v830, %v857
  %v859 = vlaneseq
  %v860 = vshrl.u32 %v859, 7
  %v861 = vsub.s32 %v846, %v860
  %v862 = vrot.slane %v831, %v861
  %v863 = vlaneseq
  %v864 = vshrl.u32 %v863, 7
  %v865 = vsub.s32 %v846, %v864
  %v866 = vrot.slane %v832, %v865
  %v867 = vlaneseq
  %v868 = vshrl.u32 %v867, 7
  %v869 = vsub.s32 %v846, %v868
  %v870 = vrot.slane %v833, %v869
  %v871 = vlaneseq
  %v872 = vshrl.u32 %v871, 7
  %v873 = vsub.s32 %v846, %v872
  %v874 = vrot.slane %v834, %v873
  %v875 = vlaneseq
  %v876 = vshrl.u32 %v875, 7
  %v877 = vsub.s32 %v846, %v876
  %v878 = vrot.slane %v835, %v877
  %vm879 = vcmask 1041409
  %v880 = vsel %vm879, %v854, %v850
  %vm881 = vcmask 1042434
  %v882 = vsel %vm881, %v858, %v880
  %vm883 = vcmask 1043459
  %v884 = vsel %vm883, %v862, %v882
  %vm885 = vcmask 1044484
  %v886 = vsel %vm885, %v866, %v884
  %vm887 = vcmask 1045509
  %v888 = vsel %vm887, %v870, %v886
  %vm889 = vcmask 1046534
  %v890 = vsel %vm889, %v874, %v888
  %vm891 = vcmask 1047559
  %v892 = vsel %vm891, %v878, %v890
  %vm893 = vcmask 64512
  %v894 = vsel %vm893, %v892, 0
  %896 = vmatprep.subr.mxu0 0.0
  %897 = vmatpush1.msra.mxu0 0.0
  %898 = vmatprep.subr.mxu0 0.0
  %899 = vmatpush1.msra.mxu0 0.0
  %900 = vmatprep.subr.mxu0 0.0
  %901 = vmatpush1.msra.mxu0 0.0
  %902 = vmatprep.subr.mxu0 0.0
  %903 = vmatpush1.msra.mxu0 0.0
  %904 = vmatprep.subr.mxu0 0.0
  %905 = vmatpush1.msra.mxu0 0.0
  %906 = vmatprep.subr.mxu0 0.0
  %907 = vmatpush1.msra.mxu0 0.0
  %908 = vmatprep.subr.mxu0 0.0
  %909 = vmatpush1.msra.mxu0 0.0
  %910 = vmatprep.subr.mxu0 0.0
  %911 = vmatpush1.msra.mxu0 0.0
  %912 = vmatprep.subr.mxu0 0.0
  %913 = vmatpush1.msra.mxu0 0.0
  %914 = vmatprep.subr.mxu0 0.0
  %915 = vmatpush1.msra.mxu0 0.0
  %916 = vmatprep.subr.mxu0 0.0
  %917 = vmatpush1.msra.mxu0 0.0
  %918 = vmatprep.subr.mxu0 0.0
  %919 = vmatpush1.msra.mxu0 0.0
  %920 = vmatprep.subr.mxu0 0.0
  %921 = vmatpush1.msra.mxu0 0.0
  %922 = vmatprep.subr.mxu0 0.0
  %923 = vmatpush1.msra.mxu0 0.0
  %924 = vmatprep.subr.mxu0 0.0
  %925 = vmatpush1.msra.mxu0 0.0
  %926 = vmatprep.subr.mxu0 0.0
  %927 = vmatpush1.msra.mxu0 %v836
  %928 = vmatprep.subr.mxu0 0.0
  %929 = vmatpush2.msra.mxu0 0.0
  %930 = vmatprep.subr.mxu0 0.0
  %931 = vmatpush2.msra.mxu0 0.0
  %932 = vmatprep.subr.mxu0 0.0
  %933 = vmatpush2.msra.mxu0 0.0
  %934 = vmatprep.subr.mxu0 0.0
  %935 = vmatpush2.msra.mxu0 0.0
  %936 = vmatprep.subr.mxu0 0.0
  %937 = vmatpush2.msra.mxu0 0.0
  %938 = vmatprep.subr.mxu0 0.0
  %939 = vmatpush2.msra.mxu0 0.0
  %940 = vmatprep.subr.mxu0 0.0
  %941 = vmatpush2.msra.mxu0 0.0
  %942 = vmatprep.subr.mxu0 0.0
  %943 = vmatpush2.msra.mxu0 0.0
  %944 = vmatprep.subr.mxu0 0.0
  %945 = vmatpush2.msra.mxu0 0.0
  %946 = vmatprep.subr.mxu0 0.0
  %947 = vmatpush2.msra.mxu0 0.0
  %948 = vmatprep.subr.mxu0 0.0
  %949 = vmatpush2.msra.mxu0 0.0
  %950 = vmatprep.subr.mxu0 0.0
  %951 = vmatpush2.msra.mxu0 0.0
  %952 = vmatprep.subr.mxu0 0.0
  %953 = vmatpush2.msra.mxu0 0.0
  %954 = vmatprep.subr.mxu0 0.0
  %955 = vmatpush2.msra.mxu0 0.0
  %956 = vmatprep.subr.mxu0 0.0
  %957 = vmatpush2.msra.mxu0 0.0
  %958 = vmatprep.subr.mxu0 0.0
  %959 = vmatpush2.msra.mxu0 0.0
  %960 = vmatprep.mubr.f32.mxu0 0.0
  %961 = vmatmul.mubr.f32.gmra.mxu0 %v894
  %v962 = vpop.f32.mrf.mxu0
  %v963 = vadd.f32 0.0, %v962
  %v964 = vpop.f32.mrf.mxu0
  %965 = vdwg.mxu0
  %v966 = vmax.f32 %v963, 0.0
  %v967 = vld [vmem:[%s4] sm:$0x3]
  %vm968 = vcmask 15360
  %v970 = vsel %vm968, %v966, 0
  %vm972 = vcmask 1041408
  %v974 = vsel %vm972, %v967, 0
  %976 = vmatprep.subr.mxu0 0.0
  %977 = vmatpush1.msra.mxu0 0.0
  %978 = vmatprep.subr.mxu0 0.0
  %979 = vmatpush1.msra.mxu0 0.0
  %980 = vmatprep.subr.mxu0 0.0
  %981 = vmatpush1.msra.mxu0 0.0
  %982 = vmatprep.subr.mxu0 0.0
  %983 = vmatpush1.msra.mxu0 0.0
  %984 = vmatprep.subr.mxu0 0.0
  %985 = vmatpush1.msra.mxu0 0.0
  %986 = vmatprep.subr.mxu0 0.0
  %987 = vmatpush1.msra.mxu0 0.0
  %988 = vmatprep.subr.mxu0 0.0
  %989 = vmatpush1.msra.mxu0 0.0
  %990 = vmatprep.subr.mxu0 0.0
  %991 = vmatpush1.msra.mxu0 0.0
  %992 = vmatprep.subr.mxu0 0.0
  %993 = vmatpush1.msra.mxu0 0.0
  %994 = vmatprep.subr.mxu0 0.0
  %995 = vmatpush1.msra.mxu0 0.0
  %996 = vmatprep.subr.mxu0 0.0
  %997 = vmatpush1.msra.mxu0 0.0
  %998 = vmatprep.subr.mxu0 0.0
  %999 = vmatpush1.msra.mxu0 0.0
  %1000 = vmatprep.subr.mxu0 0.0
  %1001 = vmatpush1.msra.mxu0 0.0
  %1002 = vmatprep.subr.mxu0 0.0
  %1003 = vmatpush1.msra.mxu0 0.0
  %1004 = vmatprep.subr.mxu0 0.0
  %1005 = vmatpush1.msra.mxu0 0.0
  %1006 = vmatprep.subr.mxu0 0.0
  %1007 = vmatpush1.msra.mxu0 %v974
  %1008 = vmatprep.subr.mxu0 0.0
  %1009 = vmatpush2.msra.mxu0 0.0
  %1010 = vmatprep.subr.mxu0 0.0
  %1011 = vmatpush2.msra.mxu0 0.0
  %1012 = vmatprep.subr.mxu0 0.0
  %1013 = vmatpush2.msra.mxu0 0.0
  %1014 = vmatprep.subr.mxu0 0.0
  %1015 = vmatpush2.msra.mxu0 0.0
  %1016 = vmatprep.subr.mxu0 0.0
  %1017 = vmatpush2.msra.mxu0 0.0
  %1018 = vmatprep.subr.mxu0 0.0
  %1019 = vmatpush2.msra.mxu0 0.0
  %1020 = vmatprep.subr.mxu0 0.0
  %1021 = vmatpush2.msra.mxu0 0.0
  %1022 = vmatprep.subr.mxu0 0.0
  %1023 = vmatpush2.msra.mxu0 0.0
  %1024 = vmatprep.subr.mxu0 0.0
  %1025 = vmatpush2.msra.mxu0 0.0
  %1026 = vmatprep.subr.mxu0 0.0
  %1027 = vmatpush2.msra.mxu0 0.0
  %1028 = vmatprep.subr.mxu0 0.0
  %1029 = vmatpush2.msra.mxu0 0.0
  %1030 = vmatprep.subr.mxu0 0.0
  %1031 = vmatpush2.msra.mxu0 0.0
  %1032 = vmatprep.subr.mxu0 0.0
  %1033 = vmatpush2.msra.mxu0 0.0
  %1034 = vmatprep.subr.mxu0 0.0
  %1035 = vmatpush2.msra.mxu0 0.0
  %1036 = vmatprep.subr.mxu0 0.0
  %1037 = vmatpush2.msra.mxu0 0.0
  %1038 = vmatprep.subr.mxu0 0.0
  %1039 = vmatpush2.msra.mxu0 0.0
  %1040 = vmatprep.mubr.f32.mxu0 0.0
  %1041 = vmatmul.mubr.f32.gmra.mxu0 %v970
  %v1042 = vpop.f32.mrf.mxu0
  %v1043 = vadd.f32 0.0, %v1042
  %v1044 = vpop.f32.mrf.mxu0
  %1045 = vdwg.mxu0
  %v1046 = vsub.f32 0.0, %v1043
  %v1047 = vmul.f32 %v1046, 1.442695
  %v1048 = vpow.pop %v1047
  %v1049 = vadd.f32 %v1048, 1.0
  %v1050 = vrcp.pop %v1049
  %v1051 = vmul.f32 1.0, %v1050
  %v1052 = vld [vmem:[%s5] sm:$0xff]
  %v1053 = vld [vmem:[%s5 + $0x8] sm:$0xff]
  %v1054 = vmul.f32 %v779, %v1052
  %v1055 = vmul.f32 %v780, %v1053
  %v1056 = vmul.f32 %v781, %v1052
  %v1057 = vmul.f32 %v782, %v1053
  %v1058 = vmul.f32 %v783, %v1052
  %v1059 = vmul.f32 %v784, %v1053
  %v1060 = vmul.f32 %v785, %v1052
  %v1061 = vmul.f32 %v786, %v1053
  %v1062 = vmul.f32 %v787, %v1052
  %v1063 = vmul.f32 %v788, %v1053
  %v1064 = vmul.f32 %v789, %v1052
  %v1065 = vmul.f32 %v790, %v1053
  %v1066 = vmul.f32 %v791, %v1052
  %v1067 = vmul.f32 %v792, %v1053
  %v1068 = vmul.f32 %v793, %v1052
  %v1069 = vmul.f32 %v794, %v1053
  %v1070 = vsel %vm795, %v1055, 0.0
  %v1071 = vadd.f32 %v1054, %v1070
  %1072 = vadd.xlane.f32.xlu0 %v1071
  %v1073 = vpop.xlane.xlu0 %1072
  %v1074 = vsel %vm795, %v1057, 0.0
  %v1075 = vadd.f32 %v1056, %v1074
  %1076 = vadd.xlane.f32.xlu0 %v1075
  %v1077 = vpop.xlane.xlu0 %1076
  %v1078 = vsel %vm795, %v1059, 0.0
  %v1079 = vadd.f32 %v1058, %v1078
  %1080 = vadd.xlane.f32.xlu0 %v1079
  %v1081 = vpop.xlane.xlu0 %1080
  %v1082 = vsel %vm795, %v1061, 0.0
  %v1083 = vadd.f32 %v1060, %v1082
  %1084 = vadd.xlane.f32.xlu0 %v1083
  %v1085 = vpop.xlane.xlu0 %1084
  %v1086 = vsel %vm795, %v1063, 0.0
  %v1087 = vadd.f32 %v1062, %v1086
  %1088 = vadd.xlane.f32.xlu0 %v1087
  %v1089 = vpop.xlane.xlu0 %1088
  %v1090 = vsel %vm795, %v1065, 0.0
  %v1091 = vadd.f32 %v1064, %v1090
  %1092 = vadd.xlane.f32.xlu0 %v1091
  %v1093 = vpop.xlane.xlu0 %1092
  %v1094 = vsel %vm795, %v1067, 0.0
  %v1095 = vadd.f32 %v1066, %v1094
  %1096 = vadd.xlane.f32.xlu0 %v1095
  %v1097 = vpop.xlane.xlu0 %1096
  %v1098 = vsel %vm795, %v1069, 0.0
  %v1099 = vadd.f32 %v1068, %v1098
  %1100 = vadd.xlane.f32.xlu0 %v1099
  %v1101 = vpop.xlane.xlu0 %1100
  %v1110 = vlaneseq
  %v1111 = vshrl.u32 %v1110, 7
  %v1112 = vsub.s32 %v846, %v1111
  %v1113 = vrot.slane %v1073, %v1112
  %v1114 = vlaneseq
  %v1115 = vshrl.u32 %v1114, 7
  %v1116 = vsub.s32 %v846, %v1115
  %v1117 = vrot.slane %v1077, %v1116
  %v1118 = vlaneseq
  %v1119 = vshrl.u32 %v1118, 7
  %v1120 = vsub.s32 %v846, %v1119
  %v1121 = vrot.slane %v1081, %v1120
  %v1122 = vlaneseq
  %v1123 = vshrl.u32 %v1122, 7
  %v1124 = vsub.s32 %v846, %v1123
  %v1125 = vrot.slane %v1085, %v1124
  %v1126 = vlaneseq
  %v1127 = vshrl.u32 %v1126, 7
  %v1128 = vsub.s32 %v846, %v1127
  %v1129 = vrot.slane %v1089, %v1128
  %v1130 = vlaneseq
  %v1131 = vshrl.u32 %v1130, 7
  %v1132 = vsub.s32 %v846, %v1131
  %v1133 = vrot.slane %v1093, %v1132
  %v1134 = vlaneseq
  %v1135 = vshrl.u32 %v1134, 7
  %v1136 = vsub.s32 %v846, %v1135
  %v1137 = vrot.slane %v1097, %v1136
  %v1138 = vlaneseq
  %v1139 = vshrl.u32 %v1138, 7
  %v1140 = vsub.s32 %v846, %v1139
  %v1141 = vrot.slane %v1101, %v1140
  %v1142 = vsel %vm879, %v1117, %v1113
  %v1143 = vsel %vm881, %v1121, %v1142
  %v1144 = vsel %vm883, %v1125, %v1143
  %v1145 = vsel %vm885, %v1129, %v1144
  %v1146 = vsel %vm887, %v1133, %v1145
  %v1147 = vsel %vm889, %v1137, %v1146
  %v1148 = vsel %vm891, %v1141, %v1147
  %v1150 = vmul.f32 %v1051, %v1148
  %v1151 = vsel %vm893, %v1150, 0.0
  %1152 = vadd.xlane.f32.xlu0 %v1151
  %v1153 = vpop.xlane.xlu0 %1152
  %s1154 = scalar_lea.vmem %s5, 16
  %v1155 = vld [vmem:[%s1154] sm:$0xff]
  %v1156 = vld [vmem:[%s1154 + $0x8] sm:$0xff]
  %v1157 = vmul.f32 %v779, %v1155
  %v1158 = vmul.f32 %v780, %v1156
  %v1159 = vmul.f32 %v781, %v1155
  %v1160 = vmul.f32 %v782, %v1156
  %v1161 = vmul.f32 %v783, %v1155
  %v1162 = vmul.f32 %v784, %v1156
  %v1163 = vmul.f32 %v785, %v1155
  %v1164 = vmul.f32 %v786, %v1156
  %v1165 = vmul.f32 %v787, %v1155
  %v1166 = vmul.f32 %v788, %v1156
  %v1167 = vmul.f32 %v789, %v1155
  %v1168 = vmul.f32 %v790, %v1156
  %v1169 = vmul.f32 %v791, %v1155
  %v1170 = vmul.f32 %v792, %v1156
  %v1171 = vmul.f32 %v793, %v1155
  %v1172 = vmul.f32 %v794, %v1156
  %v1173 = vsel %vm795, %v1158, 0.0
  %v1174 = vadd.f32 %v1157, %v1173
  %1175 = vadd.xlane.f32.xlu0 %v1174
  %v1176 = vpop.xlane.xlu0 %1175
  %v1177 = vsel %vm795, %v1160, 0.0
  %v1178 = vadd.f32 %v1159, %v1177
  %1179 = vadd.xlane.f32.xlu0 %v1178
  %v1180 = vpop.xlane.xlu0 %1179
  %v1181 = vsel %vm795, %v1162, 0.0
  %v1182 = vadd.f32 %v1161, %v1181
  %1183 = vadd.xlane.f32.xlu0 %v1182
  %v1184 = vpop.xlane.xlu0 %1183
  %v1185 = vsel %vm795, %v1164, 0.0
  %v1186 = vadd.f32 %v1163, %v1185
  %1187 = vadd.xlane.f32.xlu0 %v1186
  %v1188 = vpop.xlane.xlu0 %1187
  %v1189 = vsel %vm795, %v1166, 0.0
  %v1190 = vadd.f32 %v1165, %v1189
  %1191 = vadd.xlane.f32.xlu0 %v1190
  %v1192 = vpop.xlane.xlu0 %1191
  %v1193 = vsel %vm795, %v1168, 0.0
  %v1194 = vadd.f32 %v1167, %v1193
  %1195 = vadd.xlane.f32.xlu0 %v1194
  %v1196 = vpop.xlane.xlu0 %1195
  %v1197 = vsel %vm795, %v1170, 0.0
  %v1198 = vadd.f32 %v1169, %v1197
  %1199 = vadd.xlane.f32.xlu0 %v1198
  %v1200 = vpop.xlane.xlu0 %1199
  %v1201 = vsel %vm795, %v1172, 0.0
  %v1202 = vadd.f32 %v1171, %v1201
  %1203 = vadd.xlane.f32.xlu0 %v1202
  %v1204 = vpop.xlane.xlu0 %1203
  %v1213 = vlaneseq
  %v1214 = vshrl.u32 %v1213, 7
  %v1215 = vsub.s32 %v846, %v1214
  %v1216 = vrot.slane %v1176, %v1215
  %v1217 = vlaneseq
  %v1218 = vshrl.u32 %v1217, 7
  %v1219 = vsub.s32 %v846, %v1218
  %v1220 = vrot.slane %v1180, %v1219
  %v1221 = vlaneseq
  %v1222 = vshrl.u32 %v1221, 7
  %v1223 = vsub.s32 %v846, %v1222
  %v1224 = vrot.slane %v1184, %v1223
  %v1225 = vlaneseq
  %v1226 = vshrl.u32 %v1225, 7
  %v1227 = vsub.s32 %v846, %v1226
  %v1228 = vrot.slane %v1188, %v1227
  %v1229 = vlaneseq
  %v1230 = vshrl.u32 %v1229, 7
  %v1231 = vsub.s32 %v846, %v1230
  %v1232 = vrot.slane %v1192, %v1231
  %v1233 = vlaneseq
  %v1234 = vshrl.u32 %v1233, 7
  %v1235 = vsub.s32 %v846, %v1234
  %v1236 = vrot.slane %v1196, %v1235
  %v1237 = vlaneseq
  %v1238 = vshrl.u32 %v1237, 7
  %v1239 = vsub.s32 %v846, %v1238
  %v1240 = vrot.slane %v1200, %v1239
  %v1241 = vlaneseq
  %v1242 = vshrl.u32 %v1241, 7
  %v1243 = vsub.s32 %v846, %v1242
  %v1244 = vrot.slane %v1204, %v1243
  %v1245 = vsel %vm879, %v1220, %v1216
  %v1246 = vsel %vm881, %v1224, %v1245
  %v1247 = vsel %vm883, %v1228, %v1246
  %v1248 = vsel %vm885, %v1232, %v1247
  %v1249 = vsel %vm887, %v1236, %v1248
  %v1250 = vsel %vm889, %v1240, %v1249
  %v1251 = vsel %vm891, %v1244, %v1250
  %v1253 = vmul.f32 %v1051, %v1251
  %v1254 = vsel %vm893, %v1253, 0.0
  %1255 = vadd.xlane.f32.xlu0 %v1254
  %v1256 = vpop.xlane.xlu0 %1255
  %s1257 = scalar_lea.vmem %s5, 32
  %v1258 = vld [vmem:[%s1257] sm:$0xff]
  %v1259 = vld [vmem:[%s1257 + $0x8] sm:$0xff]
  %v1260 = vmul.f32 %v779, %v1258
  %v1261 = vmul.f32 %v780, %v1259
  %v1262 = vmul.f32 %v781, %v1258
  %v1263 = vmul.f32 %v782, %v1259
  %v1264 = vmul.f32 %v783, %v1258
  %v1265 = vmul.f32 %v784, %v1259
  %v1266 = vmul.f32 %v785, %v1258
  %v1267 = vmul.f32 %v786, %v1259
  %v1268 = vmul.f32 %v787, %v1258
  %v1269 = vmul.f32 %v788, %v1259
  %v1270 = vmul.f32 %v789, %v1258
  %v1271 = vmul.f32 %v790, %v1259
  %v1272 = vmul.f32 %v791, %v1258
  %v1273 = vmul.f32 %v792, %v1259
  %v1274 = vmul.f32 %v793, %v1258
  %v1275 = vmul.f32 %v794, %v1259
  %v1276 = vsel %vm795, %v1261, 0.0
  %v1277 = vadd.f32 %v1260, %v1276
  %1278 = vadd.xlane.f32.xlu0 %v1277
  %v1279 = vpop.xlane.xlu0 %1278
  %v1280 = vsel %vm795, %v1263, 0.0
  %v1281 = vadd.f32 %v1262, %v1280
  %1282 = vadd.xlane.f32.xlu0 %v1281
  %v1283 = vpop.xlane.xlu0 %1282
  %v1284 = vsel %vm795, %v1265, 0.0
  %v1285 = vadd.f32 %v1264, %v1284
  %1286 = vadd.xlane.f32.xlu0 %v1285
  %v1287 = vpop.xlane.xlu0 %1286
  %v1288 = vsel %vm795, %v1267, 0.0
  %v1289 = vadd.f32 %v1266, %v1288
  %1290 = vadd.xlane.f32.xlu0 %v1289
  %v1291 = vpop.xlane.xlu0 %1290
  %v1292 = vsel %vm795, %v1269, 0.0
  %v1293 = vadd.f32 %v1268, %v1292
  %1294 = vadd.xlane.f32.xlu0 %v1293
  %v1295 = vpop.xlane.xlu0 %1294
  %v1296 = vsel %vm795, %v1271, 0.0
  %v1297 = vadd.f32 %v1270, %v1296
  %1298 = vadd.xlane.f32.xlu0 %v1297
  %v1299 = vpop.xlane.xlu0 %1298
  %v1300 = vsel %vm795, %v1273, 0.0
  %v1301 = vadd.f32 %v1272, %v1300
  %1302 = vadd.xlane.f32.xlu0 %v1301
  %v1303 = vpop.xlane.xlu0 %1302
  %v1304 = vsel %vm795, %v1275, 0.0
  %v1305 = vadd.f32 %v1274, %v1304
  %1306 = vadd.xlane.f32.xlu0 %v1305
  %v1307 = vpop.xlane.xlu0 %1306
  %v1316 = vlaneseq
  %v1317 = vshrl.u32 %v1316, 7
  %v1318 = vsub.s32 %v846, %v1317
  %v1319 = vrot.slane %v1279, %v1318
  %v1320 = vlaneseq
  %v1321 = vshrl.u32 %v1320, 7
  %v1322 = vsub.s32 %v846, %v1321
  %v1323 = vrot.slane %v1283, %v1322
  %v1324 = vlaneseq
  %v1325 = vshrl.u32 %v1324, 7
  %v1326 = vsub.s32 %v846, %v1325
  %v1327 = vrot.slane %v1287, %v1326
  %v1328 = vlaneseq
  %v1329 = vshrl.u32 %v1328, 7
  %v1330 = vsub.s32 %v846, %v1329
  %v1331 = vrot.slane %v1291, %v1330
  %v1332 = vlaneseq
  %v1333 = vshrl.u32 %v1332, 7
  %v1334 = vsub.s32 %v846, %v1333
  %v1335 = vrot.slane %v1295, %v1334
  %v1336 = vlaneseq
  %v1337 = vshrl.u32 %v1336, 7
  %v1338 = vsub.s32 %v846, %v1337
  %v1339 = vrot.slane %v1299, %v1338
  %v1340 = vlaneseq
  %v1341 = vshrl.u32 %v1340, 7
  %v1342 = vsub.s32 %v846, %v1341
  %v1343 = vrot.slane %v1303, %v1342
  %v1344 = vlaneseq
  %v1345 = vshrl.u32 %v1344, 7
  %v1346 = vsub.s32 %v846, %v1345
  %v1347 = vrot.slane %v1307, %v1346
  %v1348 = vsel %vm879, %v1323, %v1319
  %v1349 = vsel %vm881, %v1327, %v1348
  %v1350 = vsel %vm883, %v1331, %v1349
  %v1351 = vsel %vm885, %v1335, %v1350
  %v1352 = vsel %vm887, %v1339, %v1351
  %v1353 = vsel %vm889, %v1343, %v1352
  %v1354 = vsel %vm891, %v1347, %v1353
  %v1356 = vmul.f32 %v1051, %v1354
  %v1357 = vsel %vm893, %v1356, 0.0
  %1358 = vadd.xlane.f32.xlu0 %v1357
  %v1359 = vpop.xlane.xlu0 %1358
  %s1360 = scalar_lea.vmem %s5, 48
  %v1361 = vld [vmem:[%s1360] sm:$0xff]
  %v1362 = vld [vmem:[%s1360 + $0x8] sm:$0xff]
  %v1363 = vmul.f32 %v779, %v1361
  %v1364 = vmul.f32 %v780, %v1362
  %v1365 = vmul.f32 %v781, %v1361
  %v1366 = vmul.f32 %v782, %v1362
  %v1367 = vmul.f32 %v783, %v1361
  %v1368 = vmul.f32 %v784, %v1362
  %v1369 = vmul.f32 %v785, %v1361
  %v1370 = vmul.f32 %v786, %v1362
  %v1371 = vmul.f32 %v787, %v1361
  %v1372 = vmul.f32 %v788, %v1362
  %v1373 = vmul.f32 %v789, %v1361
  %v1374 = vmul.f32 %v790, %v1362
  %v1375 = vmul.f32 %v791, %v1361
  %v1376 = vmul.f32 %v792, %v1362
  %v1377 = vmul.f32 %v793, %v1361
  %v1378 = vmul.f32 %v794, %v1362
  %v1379 = vsel %vm795, %v1364, 0.0
  %v1380 = vadd.f32 %v1363, %v1379
  %1381 = vadd.xlane.f32.xlu0 %v1380
  %v1382 = vpop.xlane.xlu0 %1381
  %v1383 = vsel %vm795, %v1366, 0.0
  %v1384 = vadd.f32 %v1365, %v1383
  %1385 = vadd.xlane.f32.xlu0 %v1384
  %v1386 = vpop.xlane.xlu0 %1385
  %v1387 = vsel %vm795, %v1368, 0.0
  %v1388 = vadd.f32 %v1367, %v1387
  %1389 = vadd.xlane.f32.xlu0 %v1388
  %v1390 = vpop.xlane.xlu0 %1389
  %v1391 = vsel %vm795, %v1370, 0.0
  %v1392 = vadd.f32 %v1369, %v1391
  %1393 = vadd.xlane.f32.xlu0 %v1392
  %v1394 = vpop.xlane.xlu0 %1393
  %v1395 = vsel %vm795, %v1372, 0.0
  %v1396 = vadd.f32 %v1371, %v1395
  %1397 = vadd.xlane.f32.xlu0 %v1396
  %v1398 = vpop.xlane.xlu0 %1397
  %v1399 = vsel %vm795, %v1374, 0.0
  %v1400 = vadd.f32 %v1373, %v1399
  %1401 = vadd.xlane.f32.xlu0 %v1400
  %v1402 = vpop.xlane.xlu0 %1401
  %v1403 = vsel %vm795, %v1376, 0.0
  %v1404 = vadd.f32 %v1375, %v1403
  %1405 = vadd.xlane.f32.xlu0 %v1404
  %v1406 = vpop.xlane.xlu0 %1405
  %v1407 = vsel %vm795, %v1378, 0.0
  %v1408 = vadd.f32 %v1377, %v1407
  %1409 = vadd.xlane.f32.xlu0 %v1408
  %v1410 = vpop.xlane.xlu0 %1409
  %v1419 = vlaneseq
  %v1420 = vshrl.u32 %v1419, 7
  %v1421 = vsub.s32 %v846, %v1420
  %v1422 = vrot.slane %v1382, %v1421
  %v1423 = vlaneseq
  %v1424 = vshrl.u32 %v1423, 7
  %v1425 = vsub.s32 %v846, %v1424
  %v1426 = vrot.slane %v1386, %v1425
  %v1427 = vlaneseq
  %v1428 = vshrl.u32 %v1427, 7
  %v1429 = vsub.s32 %v846, %v1428
  %v1430 = vrot.slane %v1390, %v1429
  %v1431 = vlaneseq
  %v1432 = vshrl.u32 %v1431, 7
  %v1433 = vsub.s32 %v846, %v1432
  %v1434 = vrot.slane %v1394, %v1433
  %v1435 = vlaneseq
  %v1436 = vshrl.u32 %v1435, 7
  %v1437 = vsub.s32 %v846, %v1436
  %v1438 = vrot.slane %v1398, %v1437
  %v1439 = vlaneseq
  %v1440 = vshrl.u32 %v1439, 7
  %v1441 = vsub.s32 %v846, %v1440
  %v1442 = vrot.slane %v1402, %v1441
  %v1443 = vlaneseq
  %v1444 = vshrl.u32 %v1443, 7
  %v1445 = vsub.s32 %v846, %v1444
  %v1446 = vrot.slane %v1406, %v1445
  %v1447 = vlaneseq
  %v1448 = vshrl.u32 %v1447, 7
  %v1449 = vsub.s32 %v846, %v1448
  %v1450 = vrot.slane %v1410, %v1449
  %v1451 = vsel %vm879, %v1426, %v1422
  %v1452 = vsel %vm881, %v1430, %v1451
  %v1453 = vsel %vm883, %v1434, %v1452
  %v1454 = vsel %vm885, %v1438, %v1453
  %v1455 = vsel %vm887, %v1442, %v1454
  %v1456 = vsel %vm889, %v1446, %v1455
  %v1457 = vsel %vm891, %v1450, %v1456
  %v1459 = vmul.f32 %v1051, %v1457
  %v1460 = vsel %vm893, %v1459, 0.0
  %1461 = vadd.xlane.f32.xlu0 %v1460
  %v1462 = vpop.xlane.xlu0 %1461
  %s1463 = scalar_lea.vmem %s5, 64
  %v1464 = vld [vmem:[%s1463] sm:$0xff]
  %v1465 = vld [vmem:[%s1463 + $0x8] sm:$0xff]
  %v1466 = vmul.f32 %v779, %v1464
  %v1467 = vmul.f32 %v780, %v1465
  %v1468 = vmul.f32 %v781, %v1464
  %v1469 = vmul.f32 %v782, %v1465
  %v1470 = vmul.f32 %v783, %v1464
  %v1471 = vmul.f32 %v784, %v1465
  %v1472 = vmul.f32 %v785, %v1464
  %v1473 = vmul.f32 %v786, %v1465
  %v1474 = vmul.f32 %v787, %v1464
  %v1475 = vmul.f32 %v788, %v1465
  %v1476 = vmul.f32 %v789, %v1464
  %v1477 = vmul.f32 %v790, %v1465
  %v1478 = vmul.f32 %v791, %v1464
  %v1479 = vmul.f32 %v792, %v1465
  %v1480 = vmul.f32 %v793, %v1464
  %v1481 = vmul.f32 %v794, %v1465
  %v1482 = vsel %vm795, %v1467, 0.0
  %v1483 = vadd.f32 %v1466, %v1482
  %1484 = vadd.xlane.f32.xlu0 %v1483
  %v1485 = vpop.xlane.xlu0 %1484
  %v1486 = vsel %vm795, %v1469, 0.0
  %v1487 = vadd.f32 %v1468, %v1486
  %1488 = vadd.xlane.f32.xlu0 %v1487
  %v1489 = vpop.xlane.xlu0 %1488
  %v1490 = vsel %vm795, %v1471, 0.0
  %v1491 = vadd.f32 %v1470, %v1490
  %1492 = vadd.xlane.f32.xlu0 %v1491
  %v1493 = vpop.xlane.xlu0 %1492
  %v1494 = vsel %vm795, %v1473, 0.0
  %v1495 = vadd.f32 %v1472, %v1494
  %1496 = vadd.xlane.f32.xlu0 %v1495
  %v1497 = vpop.xlane.xlu0 %1496
  %v1498 = vsel %vm795, %v1475, 0.0
  %v1499 = vadd.f32 %v1474, %v1498
  %1500 = vadd.xlane.f32.xlu0 %v1499
  %v1501 = vpop.xlane.xlu0 %1500
  %v1502 = vsel %vm795, %v1477, 0.0
  %v1503 = vadd.f32 %v1476, %v1502
  %1504 = vadd.xlane.f32.xlu0 %v1503
  %v1505 = vpop.xlane.xlu0 %1504
  %v1506 = vsel %vm795, %v1479, 0.0
  %v1507 = vadd.f32 %v1478, %v1506
  %1508 = vadd.xlane.f32.xlu0 %v1507
  %v1509 = vpop.xlane.xlu0 %1508
  %v1510 = vsel %vm795, %v1481, 0.0
  %v1511 = vadd.f32 %v1480, %v1510
  %1512 = vadd.xlane.f32.xlu0 %v1511
  %v1513 = vpop.xlane.xlu0 %1512
  %v1522 = vlaneseq
  %v1523 = vshrl.u32 %v1522, 7
  %v1524 = vsub.s32 %v846, %v1523
  %v1525 = vrot.slane %v1485, %v1524
  %v1526 = vlaneseq
  %v1527 = vshrl.u32 %v1526, 7
  %v1528 = vsub.s32 %v846, %v1527
  %v1529 = vrot.slane %v1489, %v1528
  %v1530 = vlaneseq
  %v1531 = vshrl.u32 %v1530, 7
  %v1532 = vsub.s32 %v846, %v1531
  %v1533 = vrot.slane %v1493, %v1532
  %v1534 = vlaneseq
  %v1535 = vshrl.u32 %v1534, 7
  %v1536 = vsub.s32 %v846, %v1535
  %v1537 = vrot.slane %v1497, %v1536
  %v1538 = vlaneseq
  %v1539 = vshrl.u32 %v1538, 7
  %v1540 = vsub.s32 %v846, %v1539
  %v1541 = vrot.slane %v1501, %v1540
  %v1542 = vlaneseq
  %v1543 = vshrl.u32 %v1542, 7
  %v1544 = vsub.s32 %v846, %v1543
  %v1545 = vrot.slane %v1505, %v1544
  %v1546 = vlaneseq
  %v1547 = vshrl.u32 %v1546, 7
  %v1548 = vsub.s32 %v846, %v1547
  %v1549 = vrot.slane %v1509, %v1548
  %v1550 = vlaneseq
  %v1551 = vshrl.u32 %v1550, 7
  %v1552 = vsub.s32 %v846, %v1551
  %v1553 = vrot.slane %v1513, %v1552
  %v1554 = vsel %vm879, %v1529, %v1525
  %v1555 = vsel %vm881, %v1533, %v1554
  %v1556 = vsel %vm883, %v1537, %v1555
  %v1557 = vsel %vm885, %v1541, %v1556
  %v1558 = vsel %vm887, %v1545, %v1557
  %v1559 = vsel %vm889, %v1549, %v1558
  %v1560 = vsel %vm891, %v1553, %v1559
  %v1562 = vmul.f32 %v1051, %v1560
  %v1563 = vsel %vm893, %v1562, 0.0
  %1564 = vadd.xlane.f32.xlu0 %v1563
  %v1565 = vpop.xlane.xlu0 %1564
  %vm1566 = vcmask 7168
  %v1567 = vsel %vm1566, %v1153, %v1256
  %v1568 = vsel %vm968, %v1567, %v1359
  %vm1569 = vcmask 23552
  %v1570 = vsel %vm1569, %v1568, %v1462
  %vm1571 = vcmask 31744
  %v1572 = vsel %vm1571, %v1570, %v1565
  %v1573 = vld [vmem:[%s6] sm:$0x1]
  %v1575 = vlaneseq
  %v1576 = vshrl.u32 %v1575, 7
  %v1577 = vsub.s32 0, %v1576
  %v1578 = vrot.slane %v1573, %v1577
  %v1580 = vadd.f32 %v1572, %v1578
  %vm1581 = vcmask 39936
  %v1582 = vsel %vm1581, %v1580, -inf
  %1583 = vmax.xlane.f32.xlu0 %v1582
  %v1584 = vpop.xlane.xlu0 %1583
  %v1585 = vsub.f32 %v1580, %v1584
  %v1586 = vmul.f32 %v1585, 1.442695
  %v1587 = vpow.pop %v1586
  %v1588 = vsel %vm1581, %v1587, 0.0
  %1589 = vadd.xlane.f32.xlu0 %v1588
  %v1590 = vpop.xlane.xlu0 %1589
  %v1591 = vrcp.pop %v1590
  %v1592 = vmul.f32 %v1587, %v1591
  %1593 = vst.msk [vmem:[%s7] sm:$0xff] %vm1581, %v1592
  // Predicated region
  $region30: #{se_forward.1} parent=0 // pred_check
    _
  $region31: #{se_forward.1} parent=0 // pred_check_branch
    %1595 = sbr.rel (0) target = $region33
  $region32: #{se_forward.1} parent=0 // pred_region
    _
  $region33: #{se_forward.1} parent=0 // pred_fallthru
    _
  // Predicated region
  $region34: #{se_forward.1} parent=0 // pred_check
    _
  $region35: #{se_forward.1} parent=0 // pred_check_branch
    %1597 = sbr.rel (0) target = $region37
  $region36: #{se_forward.1} parent=0 // pred_region
    _
  $region37: #{se_forward.1} parent=0 // pred_fallthru
    _

</llo_original>
